<compile_context>
chip_gen: v7x
topology: tpu7x:2x2x1
jax: 0.10.0
libtpu: 0.0.40
codegen_flags: <defaults>
</compile_context>

<pallas_src>
import functools

import jax
import jax.numpy as jnp
from jax.experimental import pallas as pl
from jax.experimental.pallas import tpu as pltpu

_TM = 512                        # row tile (N*H*W rows) for matmul-style kernels
_TC = 128                        # channel (lane) tile for depthwise kernels
_VMEM_LIMIT = 32 * 1024 * 1024   # scoped VMEM budget per kernel (fits v5e..v7x)

BN_EPS = 1e-5
STEM_CH = 40
HEAD_CH = 1536

# (expand_ratio, kernel, stride, in_ch, out_ch, num_layers) -- EfficientNet-B3
B3_STAGES = [
    (1, 3, 1, 40, 24, 2),
    (6, 3, 2, 24, 32, 3),
    (6, 5, 2, 32, 48, 3),
    (6, 3, 2, 48, 96, 5),
    (6, 5, 1, 96, 136, 5),
    (6, 5, 2, 136, 232, 6),
    (6, 3, 1, 232, 384, 2),
]


def _cdiv(a, b):
    return -(-a // b)


def _rpad(c):
    return _cdiv(c, 128) * 128


def _cparams(*sem):
    return pltpu.CompilerParams(dimension_semantics=sem,
                                vmem_limit_bytes=_VMEM_LIMIT)


# ----------------------------------------------------------------------------
# 1x1 conv / FC matmul kernel with fused BN affine, activation, SE scale, residual
# ----------------------------------------------------------------------------

def _pw_kernel(*refs, act, has_se, has_res):
    i = 0
    x_ref = refs[i]; i += 1
    se_ref = None
    if has_se:
        se_ref = refs[i]; i += 1
    w_ref, s_ref, b_ref = refs[i], refs[i + 1], refs[i + 2]; i += 3
    res_ref = None
    if has_res:
        res_ref = refs[i]; i += 1
    o_ref = refs[i]

    x = x_ref[...]
    if has_se:
        x = x.astype(jnp.float32) * se_ref[...]           # SE channel rescale fused in
    y = jnp.dot(x.astype(jnp.bfloat16), w_ref[...],
                preferred_element_type=jnp.float32)       # MXU bf16, f32 accumulate
    y = y * s_ref[...] + b_ref[...]                       # folded BatchNorm
    if act == "silu":
        y = y * jax.nn.sigmoid(y)
    elif act == "sigmoid":
        y = jax.nn.sigmoid(y)
    if has_res:
        y = y + res_ref[...].astype(jnp.float32)          # MBConv residual fused in
    o_ref[...] = y.astype(o_ref.dtype)


def pointwise_conv(x, w, scale, bias, act="none", se=None, res=None):
    """act((x [* se]) @ w * scale + bias) [+ res].  x:(N,HW,Cin) -> (N,HW,Cout) bf16."""
    N, HW, Cin = x.shape
    Cout = w.shape[1]
    thw = min(_TM, HW)
    mt = _cdiv(HW, thw)
    hwp = mt * thw
    if hwp != HW:
        x = jnp.pad(x, ((0, 0), (0, hwp - HW), (0, 0)))
        if res is not None:
            res = jnp.pad(res, ((0, 0), (0, hwp - HW), (0, 0)))

    in_specs = [pl.BlockSpec((None, thw, Cin), lambda b, m: (b, m, 0))]
    args = [x]
    if se is not None:
        in_specs.append(pl.BlockSpec((None, 1, Cin), lambda b, m: (b, 0, 0)))
        args.append(se)
    in_specs += [
        pl.BlockSpec((Cin, Cout), lambda b, m: (0, 0)),
        pl.BlockSpec((1, Cout), lambda b, m: (0, 0)),
        pl.BlockSpec((1, Cout), lambda b, m: (0, 0)),
    ]
    args += [w, scale.reshape(1, Cout), bias.reshape(1, Cout)]
    if res is not None:
        in_specs.append(pl.BlockSpec((None, thw, Cout), lambda b, m: (b, m, 0)))
        args.append(res)

    kern = functools.partial(_pw_kernel, act=act,
                             has_se=se is not None, has_res=res is not None)
    out = pl.pallas_call(
        kern,
        out_shape=jax.ShapeDtypeStruct((N, hwp, Cout), jnp.bfloat16),
        grid=(N, mt),
        in_specs=in_specs,
        out_specs=pl.BlockSpec((None, thw, Cout), lambda b, m: (b, m, 0)),
        compiler_params=_cparams("parallel", "parallel"),
    )(*args)
    return out[:, :HW, :] if hwp != HW else out


# ----------------------------------------------------------------------------
# Depthwise kxk conv (+BN+SiLU) with in-kernel tap extraction
# ----------------------------------------------------------------------------

def _phase_split(xp, s):
    """(N,Hp,Wp,C) padded input -> (N, s*s*Hq, Wq, C) phase-major layout so a stride-s
    tap (dy,dx) is the contiguous window rows [ph*Hq + dy//s, +Ho), cols [dx//s, +Wo)
    with ph = (dy % s) * s + (dx % s).  For s == 1 this is the identity."""
    N, Hp, Wp, C = xp.shape
    if s == 1:
        return xp, Hp, Wp
    Hq, Wq = _cdiv(Hp, s), _cdiv(Wp, s)
    xp = jnp.pad(xp, ((0, 0), (0, Hq * s - Hp), (0, Wq * s - Wp), (0, 0)))
    x6 = xp.reshape(N, Hq, s, Wq, s, C)
    x6 = jnp.transpose(x6, (0, 2, 4, 1, 3, 5))
    return x6.reshape(N, s * s * Hq, Wq, C), Hq, Wq


def _dw_kernel(x_ref, w_ref, s_ref, b_ref, o_ref, *, k, stride, Ho, Wo, Hq):
    tc = o_ref.shape[-1]
    acc = jnp.zeros((Ho, Wo, tc), jnp.float32)
    for dy in range(k):                                    # unrolled k*k VPU MAC
        for dx in range(k):
            ph = (dy % stride) * stride + (dx % stride)
            r0 = ph * Hq + dy // stride
            c0 = dx // stride
            tap = x_ref[r0:r0 + Ho, c0:c0 + Wo, :].astype(jnp.float32)
            wt = w_ref[dy * k + dx:dy * k + dx + 1, :].astype(jnp.float32)   # (1, tc)
            acc = acc + tap * wt
    y = acc * s_ref[...] + b_ref[...]                      # folded BatchNorm
    o_ref[...] = (y * jax.nn.sigmoid(y)).astype(o_ref.dtype)  # SiLU


def depthwise_bn_silu(x, w_kkc, k, stride, scale, bias):
    """Depthwise kxk conv ('same' pad) + folded BN + SiLU.  x:(N,H,W,C) -> (N,Ho,Wo,C)."""
    N, H, W, C = x.shape
    pad = (k - 1) // 2
    Ho = (H + 2 * pad - k) // stride + 1
    Wo = (W + 2 * pad - k) // stride + 1
    xp = jnp.pad(x, ((0, 0), (pad, pad), (pad, pad), (0, 0)))
    xs, Hq, Wq = _phase_split(xp, stride)
    ct = C // _TC
    kern = functools.partial(_dw_kernel, k=k, stride=stride, Ho=Ho, Wo=Wo, Hq=Hq)
    return pl.pallas_call(
        kern,
        out_shape=jax.ShapeDtypeStruct((N, Ho, Wo, C), jnp.bfloat16),
        grid=(N, ct),
        in_specs=[
            pl.BlockSpec((None, stride * stride * Hq, Wq, _TC), lambda b, c: (b, 0, 0, c)),
            pl.BlockSpec((k * k, _TC), lambda b, c: (0, c)),
            pl.BlockSpec((1, 1, _TC), lambda b, c: (0, 0, c)),
            pl.BlockSpec((1, 1, _TC), lambda b, c: (0, 0, c)),
        ],
        out_specs=pl.BlockSpec((None, Ho, Wo, _TC), lambda b, c: (b, 0, 0, c)),
        compiler_params=_cparams("parallel", "parallel"),
    )(xs, w_kkc, scale.reshape(1, 1, C), bias.reshape(1, 1, C))


# ----------------------------------------------------------------------------
# Stem: Conv2d(1, 40, 3, s=2, p=1) + BN + SiLU as a 9-tap broadcast MAC
# ----------------------------------------------------------------------------

def _stem_kernel(x_ref, w_ref, s_ref, b_ref, o_ref, *, k, stride, Ho, Wo, Hq):
    cout = o_ref.shape[-1]
    acc = jnp.zeros((Ho, Wo, cout), jnp.float32)
    for dy in range(k):
        for dx in range(k):
            ph = (dy % stride) * stride + (dx % stride)
            r0 = ph * Hq + dy // stride
            c0 = dx // stride
            tap = x_ref[r0:r0 + Ho, c0:c0 + Wo, :].astype(jnp.float32)   # (Ho, Wo, 1)
            wt = w_ref[dy * k + dx:dy * k + dx + 1, :].astype(jnp.float32)  # (1, cout)
            acc = acc + tap * wt                                         # lane broadcast
    y = acc * s_ref[...] + b_ref[...]
    o_ref[...] = (y * jax.nn.sigmoid(y)).astype(o_ref.dtype)


def stem_conv_bn_silu(x, w, scale, bias):
    N, H, W, _ = x.shape
    k, stride, pad = 3, 2, 1
    Ho = (H + 2 * pad - k) // stride + 1
    Wo = (W + 2 * pad - k) // stride + 1
    xp = jnp.pad(x, ((0, 0), (pad, pad), (pad, pad), (0, 0)))
    xs, Hq, Wq = _phase_split(xp, stride)
    Cout = w.shape[1]
    kern = functools.partial(_stem_kernel, k=k, stride=stride, Ho=Ho, Wo=Wo, Hq=Hq)
    return pl.pallas_call(
        kern,
        out_shape=jax.ShapeDtypeStruct((N, Ho, Wo, Cout), jnp.bfloat16),
        grid=(N,),
        in_specs=[
            pl.BlockSpec((None, stride * stride * Hq, Wq, 1), lambda b: (b, 0, 0, 0)),
            pl.BlockSpec((k * k, Cout), lambda b: (0, 0)),
            pl.BlockSpec((1, 1, Cout), lambda b: (0, 0, 0)),
            pl.BlockSpec((1, 1, Cout), lambda b: (0, 0, 0)),
        ],
        out_specs=pl.BlockSpec((None, Ho, Wo, Cout), lambda b: (b, 0, 0, 0)),
        compiler_params=_cparams("parallel"),
    )(xs, w, scale.reshape(1, 1, Cout), bias.reshape(1, 1, Cout))


# ----------------------------------------------------------------------------
# Fused SqueezeExcitation gate: GAP -> fc1 + SiLU -> fc2 + sigmoid
# ----------------------------------------------------------------------------

def _se_kernel(x_ref, w1_ref, b1_ref, w2_ref, b2_ref, o_ref, acc_ref, *, inv_hw):
    m = pl.program_id(1)

    @pl.when(m == 0)
    def _():
        acc_ref[...] = jnp.zeros_like(acc_ref)

    acc_ref[...] += jnp.sum(x_ref[...].astype(jnp.float32), axis=0, keepdims=True)

    @pl.when(m == pl.num_programs(1) - 1)
    def _():
        pooled = acc_ref[...] * inv_hw                                   # (1, Cexp)
        h = jnp.dot(pooled.astype(jnp.bfloat16), w1_ref[...],
                    preferred_element_type=jnp.float32) + b1_ref[...]
        h = h * jax.nn.sigmoid(h)                                        # SiLU
        g = jnp.dot(h.astype(jnp.bfloat16), w2_ref[...],
                    preferred_element_type=jnp.float32) + b2_ref[...]
        o_ref[...] = jax.nn.sigmoid(g)


def se_gate(x, p):
    """x:(N,HW,C) bf16 -> per-(batch,channel) gate (N,1,C) f32."""
    N, HW, C = x.shape
    csq = p["w1"].shape[1]
    thw = min(_TM, HW)
    mt = _cdiv(HW, thw)
    hwp = mt * thw
    if hwp != HW:
        x = jnp.pad(x, ((0, 0), (0, hwp - HW), (0, 0)))
    kern = functools.partial(_se_kernel, inv_hw=1.0 / float(HW))
    return pl.pallas_call(
        kern,
        out_shape=jax.ShapeDtypeStruct((N, 1, C), jnp.float32),
        grid=(N, mt),
        in_specs=[
            pl.BlockSpec((None, thw, C), lambda b, m: (b, m, 0)),
            pl.BlockSpec((C, csq), lambda b, m: (0, 0)),
            pl.BlockSpec((1, csq), lambda b, m: (0, 0)),
            pl.BlockSpec((csq, C), lambda b, m: (0, 0)),
            pl.BlockSpec((1, C), lambda b, m: (0, 0)),
        ],
        out_specs=pl.BlockSpec((None, 1, C), lambda b, m: (b, 0, 0)),
        scratch_shapes=[pltpu.VMEM((1, C), jnp.float32)],
        compiler_params=_cparams("parallel", "arbitrary"),
    )(x, p["w1"], p["b1"].reshape(1, csq), p["w2"], p["b2"].reshape(1, C))


# ----------------------------------------------------------------------------
# Fused avgpool -> flatten -> Linear head
# ----------------------------------------------------------------------------

def _head_kernel(x_ref, w_ref, b_ref, o_ref, acc_ref, *, inv_hw):
    m = pl.program_id(1)

    @pl.when(m == 0)
    def _():
        acc_ref[...] = jnp.zeros_like(acc_ref)

    acc_ref[...] += jnp.sum(x_ref[...].astype(jnp.float32), axis=0, keepdims=True)

    @pl.when(m == pl.num_programs(1) - 1)
    def _():
        pooled = acc_ref[...] * inv_hw                                   # avgpool + flatten
        o_ref[...] = jnp.dot(pooled.astype(jnp.bfloat16), w_ref[...],
                             preferred_element_type=jnp.float32) + b_ref[...]


def head_pool_fc(x, w, b):
    """x:(N,HW,C) -> logits (N, padded_num_classes) f32."""
    N, HW, C = x.shape
    ncp = w.shape[1]
    thw = min(_TM, HW)
    mt = _cdiv(HW, thw)
    hwp = mt * thw
    if hwp != HW:
        x = jnp.pad(x, ((0, 0), (0, hwp - HW), (0, 0)))
    kern = functools.partial(_head_kernel, inv_hw=1.0 / float(HW))
    out = pl.pallas_call(
        kern,
        out_shape=jax.ShapeDtypeStruct((N, 1, ncp), jnp.float32),
        grid=(N, mt),
        in_specs=[
            pl.BlockSpec((None, thw, C), lambda b, m: (b, m, 0)),
            pl.BlockSpec((C, ncp), lambda b, m: (0, 0)),
            pl.BlockSpec((1, ncp), lambda b, m: (0, 0)),
        ],
        out_specs=pl.BlockSpec((None, 1, ncp), lambda b, m: (b, 0, 0)),
        scratch_shapes=[pltpu.VMEM((1, C), jnp.float32)],
        compiler_params=_cparams("parallel", "arbitrary"),
    )(x, w, b.reshape(1, ncp))
    return out[:, 0, :]


# ----------------------------------------------------------------------------
# MBConv block (expand -> depthwise -> SE -> project, residual fused into project)
# ----------------------------------------------------------------------------

def mbconv(x, p):
    N, H, W, Cin = x.shape
    inp = x
    if "expand" in p:
        h = pointwise_conv(x.reshape(N, H * W, Cin), p["expand"]["w"],
                           p["expand"]["scale"], p["expand"]["bias"], act="silu")
        h = h.reshape(N, H, W, -1)
    else:
        h = x
    h = depthwise_bn_silu(h, p["dw"]["w"], p["k"], p["stride"],
                          p["dw"]["scale"], p["dw"]["bias"])
    N, Ho, Wo, Cexp = h.shape
    h3 = h.reshape(N, Ho * Wo, Cexp)
    gate = se_gate(h3, p["se"])                                   # (N, 1, Cexp)
    res = inp.reshape(N, H * W, Cin) if p["residual"] else None   # stride==1 -> same HW
    # TODO(synk): StochasticDepth is identity in eval mode; training-mode drop not implemented.
    y = pointwise_conv(h3, p["proj"]["w"], p["proj"]["scale"], p["proj"]["bias"],
                       act="none", se=gate, res=res)
    return y.reshape(N, Ho, Wo, -1)


# ----------------------------------------------------------------------------
# Deterministic synthetic parameters (channel dims zero-padded to multiples of 128)
# ----------------------------------------------------------------------------

def _pad1(a, n):
    return jnp.pad(a, ((0, n - a.shape[0]),))


def _pad2(a, r, c):
    return jnp.pad(a, ((0, r - a.shape[0]), (0, c - a.shape[1])))


def _bn_affine(key, c, cp):
    """Inference-mode BatchNorm folded into (scale, bias), zero-padded to cp lanes."""
    k1, k2, k3, k4 = jax.random.split(key, 4)
    gamma = 1.0 + 0.05 * jax.random.normal(k1, (c,), jnp.float32)
    beta = 0.05 * jax.random.normal(k2, (c,), jnp.float32)
    mean = 0.05 * jax.random.normal(k3, (c,), jnp.float32)
    var = 1.0 + 0.05 * jnp.abs(jax.random.normal(k4, (c,), jnp.float32))
    scale = gamma / jnp.sqrt(var + BN_EPS)
    bias = beta - mean * scale
    return _pad1(scale, cp), _pad1(bias, cp)


def _w(key, shape, fan_in):
    return jax.random.normal(key, shape, jnp.float32) * (1.0 / jnp.sqrt(float(fan_in)))


def init_params(key, num_classes):
    # TODO(synk): IMAGENET1K_V1 pretrained weights are not loadable here; deterministic synthetic init.
    keys = iter(jax.random.split(key, 2048))
    nk = lambda: next(keys)
    params = {"num_classes": num_classes}

    stem_cp = _rpad(STEM_CH)
    s, b = _bn_affine(nk(), STEM_CH, stem_cp)
    params["stem"] = {"w": _pad2(_w(nk(), (9, STEM_CH), 9), 9, stem_cp),
                      "scale": s, "bias": b}

    stages = []
    for (exp_r, k, stride, cin_stage, cout, nlayers) in B3_STAGES:
        blocks = []
        for li in range(nlayers):
            cin = cin_stage if li == 0 else cout
            st = stride if li == 0 else 1
            cexp = cin * exp_r
            csq = max(1, cin // 4)
            cin_p, cexp_p = _rpad(cin), _rpad(cexp)
            cout_p, csq_p = _rpad(cout), _rpad(csq)
            blk = {"k": k, "stride": st, "residual": (st == 1 and cin == cout)}
            if cexp != cin:
                s, b = _bn_affine(nk(), cexp, cexp_p)
                blk["expand"] = {
                    "w": _pad2(_w(nk(), (cin, cexp), cin), cin_p, cexp_p).astype(jnp.bfloat16),
                    "scale": s, "bias": b}
            s, b = _bn_affine(nk(), cexp, cexp_p)
            blk["dw"] = {"w": _pad2(_w(nk(), (k * k, cexp), k * k), k * k, cexp_p),
                         "scale": s, "bias": b}
            blk["se"] = {
                "w1": _pad2(_w(nk(), (cexp, csq), cexp), cexp_p, csq_p).astype(jnp.bfloat16),
                "b1": _pad1(0.05 * jax.random.normal(nk(), (csq,), jnp.float32), csq_p),
                "w2": _pad2(_w(nk(), (csq, cexp), csq), csq_p, cexp_p).astype(jnp.bfloat16),
                "b2": _pad1(0.05 * jax.random.normal(nk(), (cexp,), jnp.float32), cexp_p),
            }
            s, b = _bn_affine(nk(), cout, cout_p)
            blk["proj"] = {
                "w": _pad2(_w(nk(), (cexp, cout), cexp), cexp_p, cout_p).astype(jnp.bfloat16),
                "scale": s, "bias": b}
            blocks.append(blk)
        stages.append(blocks)
    params["stages"] = stages

    s, b = _bn_affine(nk(), HEAD_CH, HEAD_CH)
    params["head"] = {"w": _w(nk(), (384, HEAD_CH), 384).astype(jnp.bfloat16),
                      "scale": s, "bias": b}
    ncp = _rpad(num_classes)
    params["fc"] = {
        "w": _pad2(_w(nk(), (HEAD_CH, num_classes), HEAD_CH), HEAD_CH, ncp).astype(jnp.bfloat16),
        "b": _pad1(0.05 * jax.random.normal(nk(), (num_classes,), jnp.float32), ncp)}
    return params


# ----------------------------------------------------------------------------
# Classifier.forward
# ----------------------------------------------------------------------------

def classifier_forward(x_nchw, params, copycat_features=None):
    num_classes = params["num_classes"]
    x = jnp.transpose(x_nchw, (0, 2, 3, 1)).astype(jnp.float32)     # NCHW -> NHWC
    taps = []

    # x1 = features[0](x)  (stem)
    x = stem_conv_bn_silu(x, params["stem"]["w"],
                          params["stem"]["scale"], params["stem"]["bias"])
    taps.append((x, STEM_CH))

    for si, blocks in enumerate(params["stages"]):
        for blk in blocks:
            x = mbconv(x, blk)
        if si == 2 and copycat_features is not None:                # x4 = features[3] output
            cc = jnp.transpose(copycat_features[3], (0, 2, 3, 1)).astype(x.dtype)
            cc = jnp.pad(cc, ((0, 0), (0, 0), (0, 0), (0, x.shape[-1] - cc.shape[-1])))
            x = x + cc
        if si <= 3:                                                 # x2 .. x5 = features[1..4]
            taps.append((x, B3_STAGES[si][4]))

    # features[8]: head Conv2dNormActivation (1x1, 384 -> 1536, BN, SiLU)
    N, H, W, C = x.shape
    xh = pointwise_conv(x.reshape(N, H * W, C), params["head"]["w"],
                        params["head"]["scale"], params["head"]["bias"], act="silu")
    taps.append((xh.reshape(N, H, W, -1), HEAD_CH))                 # x6

    # avgpool -> dropout -> flatten -> fc
    # TODO(synk): nn.Dropout(0.4) is identity in eval mode; training-mode masking not implemented.
    logits = head_pool_fc(xh, params["fc"]["w"], params["fc"]["b"])[:, :num_classes]

    inter_nchw = [jnp.transpose(t[..., :c], (0, 3, 1, 2)).astype(jnp.float32)
                  for (t, c) in taps]                               # NCHW, true channel counts
    return logits, inter_nchw


# ----------------------------------------------------------------------------

if __name__ == "__main__":
    # NIH ChestXray: 'No Finding' + 14 findings -> 15 classes, 1-channel input.
    classid_list = ["No Finding"] + [f"Disease_{i}" for i in range(14)]
    num_classes = len(classid_list)

    key = jax.random.PRNGKey(0)
    pkey, xkey = jax.random.split(key)
    params = init_params(pkey, num_classes)

    x = jax.random.normal(xkey, (2, 1, 32, 32), jnp.float32)        # small NCHW chest X-ray batch

    logits, feats = classifier_forward(x, params, copycat_features=None)
    logits = jax.block_until_ready(logits)
    feats = jax.block_until_ready(feats)

    assert logits.shape == (2, num_classes)
    assert len(feats) == 6
    assert feats[0].shape[1] == 40 and feats[-1].shape[1] == 1536
    assert bool(jnp.all(jnp.isfinite(logits)))
    print("KERNEL_OK")
</pallas_src>

<mosaic_0001>
module attributes {stable_mosaic.version = 11 : i64} {
  func.func @_stem_kernel(%arg0: i32, %arg1: memref<1x68x17x1xf32, #tpu.memory_space<vmem>>, %arg2: memref<9x128xf32, #tpu.memory_space<vmem>>, %arg3: memref<1x1x128xf32, #tpu.memory_space<vmem>>, %arg4: memref<1x1x128xf32, #tpu.memory_space<vmem>>, %arg5: memref<1x16x16x128xbf16, #tpu.memory_space<vmem>>) attributes {dimension_semantics = [#tpu.dimension_semantics<parallel>], iteration_bounds = array<i64: 2>, scalar_prefetch = 0 : i64, scratch_operands = 0 : i64, tpu.core_type = #tpu.core_type<tc>, window_params = [{transform_indices = @transform_0, window_bounds = array<i64: 1, 68, 17, 1>}, {pipeline_mode = #tpu.pipeline_mode<synchronous>, transform_indices = @transform_1, window_bounds = array<i64: 9, 128>}, {pipeline_mode = #tpu.pipeline_mode<synchronous>, transform_indices = @transform_2, window_bounds = array<i64: 1, 1, 128>}, {pipeline_mode = #tpu.pipeline_mode<synchronous>, transform_indices = @transform_3, window_bounds = array<i64: 1, 1, 128>}, {transform_indices = @transform_4, window_bounds = array<i64: 1, 16, 16, 128>}]} {
    %cst = arith.constant 0.000000e+00 : f32
    %0 = vector.broadcast %cst : f32 to vector<16x16x128xf32>
    %c0 = arith.constant 0 : index
    %c0_0 = arith.constant 0 : index
    %c0_1 = arith.constant 0 : index
    %c0_2 = arith.constant 0 : index
    %1 = vector.load %arg1[%c0, %c0_0, %c0_1, %c0_2] : memref<1x68x17x1xf32, #tpu.memory_space<vmem>>, vector<1x16x16x1xf32>
    %2 = vector.shape_cast %1 : vector<1x16x16x1xf32> to vector<16x16x1xf32>
    %c0_3 = arith.constant 0 : index
    %c0_4 = arith.constant 0 : index
    %3 = vector.load %arg2[%c0_3, %c0_4] : memref<9x128xf32, #tpu.memory_space<vmem>>, vector<1x128xf32>
    %4 = vector.shape_cast %3 : vector<1x128xf32> to vector<1x1x128xf32>
    %5 = vector.broadcast %2 : vector<16x16x1xf32> to vector<16x16x128xf32>
    %6 = vector.broadcast %4 : vector<1x1x128xf32> to vector<16x16x128xf32>
    %7 = arith.mulf %5, %6 : vector<16x16x128xf32>
    %8 = arith.addf %0, %7 : vector<16x16x128xf32>
    %c0_5 = arith.constant 0 : index
    %c17 = arith.constant 17 : index
    %c0_6 = arith.constant 0 : index
    %c0_7 = arith.constant 0 : index
    %9 = vector.load %arg1[%c0_5, %c17, %c0_6, %c0_7] : memref<1x68x17x1xf32, #tpu.memory_space<vmem>>, vector<1x16x16x1xf32>
    %10 = vector.shape_cast %9 : vector<1x16x16x1xf32> to vector<16x16x1xf32>
    %c1 = arith.constant 1 : index
    %c0_8 = arith.constant 0 : index
    %11 = vector.load %arg2[%c1, %c0_8] : memref<9x128xf32, #tpu.memory_space<vmem>>, vector<1x128xf32>
    %12 = vector.shape_cast %11 : vector<1x128xf32> to vector<1x1x128xf32>
    %13 = vector.broadcast %10 : vector<16x16x1xf32> to vector<16x16x128xf32>
    %14 = vector.broadcast %12 : vector<1x1x128xf32> to vector<16x16x128xf32>
    %15 = arith.mulf %13, %14 : vector<16x16x128xf32>
    %16 = arith.addf %8, %15 : vector<16x16x128xf32>
    %c0_9 = arith.constant 0 : index
    %c0_10 = arith.constant 0 : index
    %c1_11 = arith.constant 1 : index
    %c0_12 = arith.constant 0 : index
    %17 = vector.load %arg1[%c0_9, %c0_10, %c1_11, %c0_12] : memref<1x68x17x1xf32, #tpu.memory_space<vmem>>, vector<1x16x16x1xf32>
    %18 = vector.shape_cast %17 : vector<1x16x16x1xf32> to vector<16x16x1xf32>
    %c2 = arith.constant 2 : index
    %c0_13 = arith.constant 0 : index
    %19 = vector.load %arg2[%c2, %c0_13] : memref<9x128xf32, #tpu.memory_space<vmem>>, vector<1x128xf32>
    %20 = vector.shape_cast %19 : vector<1x128xf32> to vector<1x1x128xf32>
    %21 = vector.broadcast %18 : vector<16x16x1xf32> to vector<16x16x128xf32>
    %22 = vector.broadcast %20 : vector<1x1x128xf32> to vector<16x16x128xf32>
    %23 = arith.mulf %21, %22 : vector<16x16x128xf32>
    %24 = arith.addf %16, %23 : vector<16x16x128xf32>
    %c0_14 = arith.constant 0 : index
    %c34 = arith.constant 34 : index
    %c0_15 = arith.constant 0 : index
    %c0_16 = arith.constant 0 : index
    %25 = vector.load %arg1[%c0_14, %c34, %c0_15, %c0_16] : memref<1x68x17x1xf32, #tpu.memory_space<vmem>>, vector<1x16x16x1xf32>
    %26 = vector.shape_cast %25 : vector<1x16x16x1xf32> to vector<16x16x1xf32>
    %c3 = arith.constant 3 : index
    %c0_17 = arith.constant 0 : index
    %27 = vector.load %arg2[%c3, %c0_17] : memref<9x128xf32, #tpu.memory_space<vmem>>, vector<1x128xf32>
    %28 = vector.shape_cast %27 : vector<1x128xf32> to vector<1x1x128xf32>
    %29 = vector.broadcast %26 : vector<16x16x1xf32> to vector<16x16x128xf32>
    %30 = vector.broadcast %28 : vector<1x1x128xf32> to vector<16x16x128xf32>
    %31 = arith.mulf %29, %30 : vector<16x16x128xf32>
    %32 = arith.addf %24, %31 : vector<16x16x128xf32>
    %c0_18 = arith.constant 0 : index
    %c51 = arith.constant 51 : index
    %c0_19 = arith.constant 0 : index
    %c0_20 = arith.constant 0 : index
    %33 = vector.load %arg1[%c0_18, %c51, %c0_19, %c0_20] : memref<1x68x17x1xf32, #tpu.memory_space<vmem>>, vector<1x16x16x1xf32>
    %34 = vector.shape_cast %33 : vector<1x16x16x1xf32> to vector<16x16x1xf32>
    %c4 = arith.constant 4 : index
    %c0_21 = arith.constant 0 : index
    %35 = vector.load %arg2[%c4, %c0_21] : memref<9x128xf32, #tpu.memory_space<vmem>>, vector<1x128xf32>
    %36 = vector.shape_cast %35 : vector<1x128xf32> to vector<1x1x128xf32>
    %37 = vector.broadcast %34 : vector<16x16x1xf32> to vector<16x16x128xf32>
    %38 = vector.broadcast %36 : vector<1x1x128xf32> to vector<16x16x128xf32>
    %39 = arith.mulf %37, %38 : vector<16x16x128xf32>
    %40 = arith.addf %32, %39 : vector<16x16x128xf32>
    %c0_22 = arith.constant 0 : index
    %c34_23 = arith.constant 34 : index
    %c1_24 = arith.constant 1 : index
    %c0_25 = arith.constant 0 : index
    %41 = vector.load %arg1[%c0_22, %c34_23, %c1_24, %c0_25] : memref<1x68x17x1xf32, #tpu.memory_space<vmem>>, vector<1x16x16x1xf32>
    %42 = vector.shape_cast %41 : vector<1x16x16x1xf32> to vector<16x16x1xf32>
    %c5 = arith.constant 5 : index
    %c0_26 = arith.constant 0 : index
    %43 = vector.load %arg2[%c5, %c0_26] : memref<9x128xf32, #tpu.memory_space<vmem>>, vector<1x128xf32>
    %44 = vector.shape_cast %43 : vector<1x128xf32> to vector<1x1x128xf32>
    %45 = vector.broadcast %42 : vector<16x16x1xf32> to vector<16x16x128xf32>
    %46 = vector.broadcast %44 : vector<1x1x128xf32> to vector<16x16x128xf32>
    %47 = arith.mulf %45, %46 : vector<16x16x128xf32>
    %48 = arith.addf %40, %47 : vector<16x16x128xf32>
    %c0_27 = arith.constant 0 : index
    %c1_28 = arith.constant 1 : index
    %c0_29 = arith.constant 0 : index
    %c0_30 = arith.constant 0 : index
    %49 = vector.load %arg1[%c0_27, %c1_28, %c0_29, %c0_30] : memref<1x68x17x1xf32, #tpu.memory_space<vmem>>, vector<1x16x16x1xf32>
    %50 = vector.shape_cast %49 : vector<1x16x16x1xf32> to vector<16x16x1xf32>
    %c6 = arith.constant 6 : index
    %c0_31 = arith.constant 0 : index
    %51 = vector.load %arg2[%c6, %c0_31] : memref<9x128xf32, #tpu.memory_space<vmem>>, vector<1x128xf32>
    %52 = vector.shape_cast %51 : vector<1x128xf32> to vector<1x1x128xf32>
    %53 = vector.broadcast %50 : vector<16x16x1xf32> to vector<16x16x128xf32>
    %54 = vector.broadcast %52 : vector<1x1x128xf32> to vector<16x16x128xf32>
    %55 = arith.mulf %53, %54 : vector<16x16x128xf32>
    %56 = arith.addf %48, %55 : vector<16x16x128xf32>
    %c0_32 = arith.constant 0 : index
    %c18 = arith.constant 18 : index
    %c0_33 = arith.constant 0 : index
    %c0_34 = arith.constant 0 : index
    %57 = vector.load %arg1[%c0_32, %c18, %c0_33, %c0_34] : memref<1x68x17x1xf32, #tpu.memory_space<vmem>>, vector<1x16x16x1xf32>
    %58 = vector.shape_cast %57 : vector<1x16x16x1xf32> to vector<16x16x1xf32>
    %c7 = arith.constant 7 : index
    %c0_35 = arith.constant 0 : index
    %59 = vector.load %arg2[%c7, %c0_35] : memref<9x128xf32, #tpu.memory_space<vmem>>, vector<1x128xf32>
    %60 = vector.shape_cast %59 : vector<1x128xf32> to vector<1x1x128xf32>
    %61 = vector.broadcast %58 : vector<16x16x1xf32> to vector<16x16x128xf32>
    %62 = vector.broadcast %60 : vector<1x1x128xf32> to vector<16x16x128xf32>
    %63 = arith.mulf %61, %62 : vector<16x16x128xf32>
    %64 = arith.addf %56, %63 : vector<16x16x128xf32>
    %c0_36 = arith.constant 0 : index
    %c1_37 = arith.constant 1 : index
    %c1_38 = arith.constant 1 : index
    %c0_39 = arith.constant 0 : index
    %65 = vector.load %arg1[%c0_36, %c1_37, %c1_38, %c0_39] : memref<1x68x17x1xf32, #tpu.memory_space<vmem>>, vector<1x16x16x1xf32>
    %66 = vector.shape_cast %65 : vector<1x16x16x1xf32> to vector<16x16x1xf32>
    %c8 = arith.constant 8 : index
    %c0_40 = arith.constant 0 : index
    %67 = vector.load %arg2[%c8, %c0_40] : memref<9x128xf32, #tpu.memory_space<vmem>>, vector<1x128xf32>
    %68 = vector.shape_cast %67 : vector<1x128xf32> to vector<1x1x128xf32>
    %69 = vector.broadcast %66 : vector<16x16x1xf32> to vector<16x16x128xf32>
    %70 = vector.broadcast %68 : vector<1x1x128xf32> to vector<16x16x128xf32>
    %71 = arith.mulf %69, %70 : vector<16x16x128xf32>
    %72 = arith.addf %64, %71 : vector<16x16x128xf32>
    %c0_41 = arith.constant 0 : index
    %c0_42 = arith.constant 0 : index
    %c0_43 = arith.constant 0 : index
    %73 = vector.load %arg3[%c0_41, %c0_42, %c0_43] : memref<1x1x128xf32, #tpu.memory_space<vmem>>, vector<1x1x128xf32>
    %74 = vector.broadcast %73 : vector<1x1x128xf32> to vector<16x16x128xf32>
    %75 = arith.mulf %72, %74 : vector<16x16x128xf32>
    %c0_44 = arith.constant 0 : index
    %c0_45 = arith.constant 0 : index
    %c0_46 = arith.constant 0 : index
    %76 = vector.load %arg4[%c0_44, %c0_45, %c0_46] : memref<1x1x128xf32, #tpu.memory_space<vmem>>, vector<1x1x128xf32>
    %77 = vector.broadcast %76 : vector<1x1x128xf32> to vector<16x16x128xf32>
    %78 = arith.addf %75, %77 : vector<16x16x128xf32>
    %79 = arith.negf %78 : vector<16x16x128xf32>
    %80 = math.exp %79 : vector<16x16x128xf32>
    %cst_47 = arith.constant 1.000000e+00 : f32
    %81 = vector.broadcast %cst_47 : f32 to vector<16x16x128xf32>
    %82 = arith.addf %81, %80 : vector<16x16x128xf32>
    %83 = arith.divf %81, %82 : vector<16x16x128xf32>
    %84 = arith.mulf %78, %83 : vector<16x16x128xf32>
    %85 = arith.truncf %84 : vector<16x16x128xf32> to vector<16x16x128xbf16>
    %c0_48 = arith.constant 0 : index
    %c0_49 = arith.constant 0 : index
    %c0_50 = arith.constant 0 : index
    %c0_51 = arith.constant 0 : index
    %86 = vector.load %arg5[%c0_48, %c0_49, %c0_50, %c0_51] : memref<1x16x16x128xbf16, #tpu.memory_space<vmem>>, vector<1x16x16x128xbf16>
    %87 = vector.shape_cast %86 : vector<1x16x16x128xbf16> to vector<16x16x128xbf16>
    %88 = vector.shape_cast %85 : vector<16x16x128xbf16> to vector<1x16x16x128xbf16>
    tpu.vector_store %arg5[%c0_48, %c0_49, %c0_50, %c0_51], %88 {strides = array<i32>} : memref<1x16x16x128xbf16, #tpu.memory_space<vmem>>, vector<1x16x16x128xbf16>,
    return
  }
  func.func @transform_0(%arg0: i32) -> (i32, i32, i32, i32) {
    %c0_i32 = arith.constant 0 : i32
    %c0_i32_0 = arith.constant 0 : i32
    %c0_i32_1 = arith.constant 0 : i32
    %c0_i32_2 = arith.constant 0 : i32
    return %arg0, %c0_i32, %c0_i32_0, %c0_i32_1 : i32, i32, i32, i32
  }
  func.func @transform_1(%arg0: i32) -> (i32, i32) {
    %c0_i32 = arith.constant 0 : i32
    %c0_i32_0 = arith.constant 0 : i32
    %c0_i32_1 = arith.constant 0 : i32
    return %c0_i32, %c0_i32_0 : i32, i32
  }
  func.func @transform_2(%arg0: i32) -> (i32, i32, i32) {
    %c0_i32 = arith.constant 0 : i32
    %c0_i32_0 = arith.constant 0 : i32
    %c0_i32_1 = arith.constant 0 : i32
    %c0_i32_2 = arith.constant 0 : i32
    return %c0_i32, %c0_i32_0, %c0_i32_1 : i32, i32, i32
  }
  func.func @transform_3(%arg0: i32) -> (i32, i32, i32) {
    %c0_i32 = arith.constant 0 : i32
    %c0_i32_0 = arith.constant 0 : i32
    %c0_i32_1 = arith.constant 0 : i32
    %c0_i32_2 = arith.constant 0 : i32
    return %c0_i32, %c0_i32_0, %c0_i32_1 : i32, i32, i32
  }
  func.func @transform_4(%arg0: i32) -> (i32, i32, i32, i32) {
    %c0_i32 = arith.constant 0 : i32
    %c0_i32_0 = arith.constant 0 : i32
    %c0_i32_1 = arith.constant 0 : i32
    %c0_i32_2 = arith.constant 0 : i32
    return %arg0, %c0_i32, %c0_i32_0, %c0_i32_1 : i32, i32, i32, i32
  }
}

</mosaic_0001>

<llo_original>
// kernel: tpu_custom_call.1
$region0: #{tpu_custom_call.1}
  #allocation0 [shape = 'u32[]', space=smem, size = 0x4, offset = 0x4, fixed_abs, tag = 'smem constant byte address 0x4 - core index']
  #allocation1 [shape = 'u32[144,128]{1,0:T(1,128)}', space=vmem, size = 0x12000, scoped, tag = 'internal scratch']
  %s0 = inlined_call_operand.vmem [shape: f32[2,68,17,1], index: 0, kind: input, shape index: {}]
  %s1 = inlined_call_operand.vmem [shape: f32[9,128], index: 1, kind: input, shape index: {}]
  %s2 = inlined_call_operand.vmem [shape: f32[1,1,128], index: 2, kind: input, shape index: {}]
  %s3 = inlined_call_operand.vmem [shape: f32[1,1,128], index: 3, kind: input, shape index: {}]
  %s4 = inlined_call_operand.hbm [shape: bf16[2,16,16,128], index: 4, kind: output, shape index: {}]
  %s5 = sld [smem:[#allocation0]]
  $region49: #{tpu_custom_call.1} parent=0
    _
  %s7 = ssub.s32 1, %s5
  %s8 = scalar_select 0, %s7, %s5
  $region1: #{tpu_custom_call.1} parent=0
    #allocation2 [shape = 'u8[131072]{0}', space=vmem, size = 0x20000, scoped, tag = 'output window, operand 0']
    #allocation3 [shape = 's32[2]{0}', space=sflag, size = 0x8, scoped, tag = 'scoped memory for tpu_custom_call.1']
    %9 = vsyncpa [#allocation3], 0
    %s10 = scalar_lea.sflag [#allocation3], 1
    %11 = vsyncpa %s10, 0
    loop: start=0, step=1, limit=4
    $region2: #{tpu_custom_call.1} parent=1 // loop_pre_header
      _
    $region3: #{tpu_custom_call.1} parent=1 // loop_header
      %s13 = sphi 0, %s17
      %p14 = scmp.ge.s32.totalorder %s13, 4
      %s23 = sphi 0, %s25
      %s26 = sphi 0, %s23
      %s27 = sphi 0, %s26
      %s43 = sphi 0, %s27
      %s47 = sphi 0, %s47
      %s49 = sphi 0, %s47
      %s50 = sphi 0, %s49
      %s64 = sphi 0, %s50
      %s68 = sphi 0, %s68
      %s70 = sphi 0, %s68
      %s71 = sphi 0, %s70
      %s85 = sphi 0, %s71
      %s89 = sphi 0, %s89
      %s91 = sphi 0, %s89
      %s92 = sphi 0, %s91
      %s106 = sphi 0, %s92
      %s112 = sphi 0, %s114
      %s115 = sphi 0, %s112
      %s116 = sphi 0, %s115
      %s132 = sphi 0, %s116
    $region4: #{tpu_custom_call.1} parent=1 // loop_header_branch
      %16 = sbr.rel (%p14) target = $region8
    $region5: #{tpu_custom_call.1} parent=1 // loop_body
      %s18 = ssub.s32 %s13, 1
      %s19 = ssub.s32 %s13, 2
      %s20 = sadd.s32 %s13, 1
      %s21 = ssub.s32 %s13, %s20
      %p22 = scmp.eq.s32.totalorder %s21, 0
      %s24 = sadd.s32 %s23, 1
      %s25 = scalar_select %p22, %s23, %s24
      %p28 = pneg %p22
      %p29 = scmp.eq.s32.totalorder %s13, 1
      %p30 = por %p28, %p29
      %p31 = scmp.ne.s32.totalorder %s23, %s26
      %p32 = scmp.eq.s32.totalorder %s13, 0
      %p33 = por %p31, %p32
      %p34 = scmp.ne.s32.totalorder %s23, %s26
      %p35 = scmp.eq.s32.totalorder %s18, 1
      %p36 = por %p34, %p35
      %p37 = scmp.ne.s32.totalorder %s26, %s27
      %p38 = scmp.eq.s32.totalorder %s18, 0
      %p39 = por %p37, %p38
      %p40 = scmp.ne.s32.totalorder %s26, %s27
      %p41 = scmp.eq.s32.totalorder %s19, 1
      %p42 = por %p40, %p41
      %p44 = scmp.ne.s32.totalorder %s27, %s43
      %p45 = scmp.eq.s32.totalorder %s19, 0
      %p46 = por %p44, %p45
      %s48 = sadd.s32 %s47, 1
      %p51 = scmp.eq.s32.totalorder %s13, 1
      %p52 = scmp.ne.s32.totalorder %s47, %s49
      %p53 = scmp.eq.s32.totalorder %s13, 0
      %p54 = por %p52, %p53
      %p55 = scmp.ne.s32.totalorder %s47, %s49
      %p56 = scmp.eq.s32.totalorder %s18, 1
      %p57 = por %p55, %p56
      %p58 = scmp.ne.s32.totalorder %s49, %s50
      %p59 = scmp.eq.s32.totalorder %s18, 0
      %p60 = por %p58, %p59
      %p61 = scmp.ne.s32.totalorder %s49, %s50
      %p62 = scmp.eq.s32.totalorder %s19, 1
      %p63 = por %p61, %p62
      %p65 = scmp.ne.s32.totalorder %s50, %s64
      %p66 = scmp.eq.s32.totalorder %s19, 0
      %p67 = por %p65, %p66
      %s69 = sadd.s32 %s68, 1
      %p72 = scmp.eq.s32.totalorder %s13, 1
      %p73 = scmp.ne.s32.totalorder %s68, %s70
      %p74 = scmp.eq.s32.totalorder %s13, 0
      %p75 = por %p73, %p74
      %p76 = scmp.ne.s32.totalorder %s68, %s70
      %p77 = scmp.eq.s32.totalorder %s18, 1
      %p78 = por %p76, %p77
      %p79 = scmp.ne.s32.totalorder %s70, %s71
      %p80 = scmp.eq.s32.totalorder %s18, 0
      %p81 = por %p79, %p80
      %p82 = scmp.ne.s32.totalorder %s70, %s71
      %p83 = scmp.eq.s32.totalorder %s19, 1
      %p84 = por %p82, %p83
      %p86 = scmp.ne.s32.totalorder %s71, %s85
      %p87 = scmp.eq.s32.totalorder %s19, 0
      %p88 = por %p86, %p87
      %s90 = sadd.s32 %s89, 1
      %p93 = scmp.eq.s32.totalorder %s13, 1
      %p94 = scmp.ne.s32.totalorder %s89, %s91
      %p95 = scmp.eq.s32.totalorder %s13, 0
      %p96 = por %p94, %p95
      %p97 = scmp.ne.s32.totalorder %s89, %s91
      %p98 = scmp.eq.s32.totalorder %s18, 1
      %p99 = por %p97, %p98
      %p100 = scmp.ne.s32.totalorder %s91, %s92
      %p101 = scmp.eq.s32.totalorder %s18, 0
      %p102 = por %p100, %p101
      %p103 = scmp.ne.s32.totalorder %s91, %s92
      %p104 = scmp.eq.s32.totalorder %s19, 1
      %p105 = por %p103, %p104
      %p107 = scmp.ne.s32.totalorder %s92, %s106
      %p108 = scmp.eq.s32.totalorder %s19, 0
      %p109 = por %p107, %p108
      %s110 = ssub.s32 %s13, %s20
      %p111 = scmp.eq.s32.totalorder %s110, 0
      %s113 = sadd.s32 %s112, 1
      %s114 = scalar_select %p111, %s112, %s113
      %p117 = pneg %p111
      %p118 = scmp.eq.s32.totalorder %s13, 1
      %p119 = por %p117, %p118
      %p120 = scmp.ne.s32.totalorder %s112, %s115
      %p121 = scmp.eq.s32.totalorder %s13, 0
      %p122 = por %p120, %p121
      %p123 = scmp.ne.s32.totalorder %s112, %s115
      %p124 = scmp.eq.s32.totalorder %s18, 1
      %p125 = por %p123, %p124
      %p126 = scmp.ne.s32.totalorder %s115, %s116
      %p127 = scmp.eq.s32.totalorder %s18, 0
      %p128 = por %p126, %p127
      %p129 = scmp.ne.s32.totalorder %s115, %s116
      %p130 = scmp.eq.s32.totalorder %s19, 1
      %p131 = por %p129, %p130
      %p133 = scmp.ne.s32.totalorder %s116, %s132
      %p134 = scmp.eq.s32.totalorder %s19, 0
      %p135 = por %p133, %p134
      %p136 = scmp.le.s32.totalorder 1, %s13
      %p137 = scmp.lt.s32.totalorder %s13, 3
      %p138 = pnand %p136, %p137
      %p139 = pneg %p138
      // Predicated region
      $region9: #{tpu_custom_call.1} parent=5 // pred_check
        _
      $region10: #{tpu_custom_call.1} parent=5 // pred_check_branch
        %141 = sbr.rel (%p138) target = $region12
      $region11: #{tpu_custom_call.1} parent=5 // pred_region
        %s142 = ssub.s32 %s13, 1
        // Predicated region
        $region13: #{tpu_custom_call.1} parent=11 // pred_check
          %p143 = pneg %p60
        $region14: #{tpu_custom_call.1} parent=11 // pred_check_branch
          %145 = sbr.rel (%p143) target = $region16
        $region15: #{tpu_custom_call.1} parent=11 // pred_region
          _
        $region16: #{tpu_custom_call.1} parent=11 // pred_fallthru
          _
        // Predicated region
        $region17: #{tpu_custom_call.1} parent=11 // pred_check
          %p146 = pneg %p81
        $region18: #{tpu_custom_call.1} parent=11 // pred_check_branch
          %148 = sbr.rel (%p146) target = $region20
        $region19: #{tpu_custom_call.1} parent=11 // pred_region
          _
        $region20: #{tpu_custom_call.1} parent=11 // pred_fallthru
          _
        // Predicated region
        $region21: #{tpu_custom_call.1} parent=11 // pred_check
          %p149 = pneg %p102
        $region22: #{tpu_custom_call.1} parent=11 // pred_check_branch
          %151 = sbr.rel (%p149) target = $region24
        $region23: #{tpu_custom_call.1} parent=11 // pred_region
          _
        $region24: #{tpu_custom_call.1} parent=11 // pred_fallthru
          _
      $region12: #{tpu_custom_call.1} parent=5 // pred_fallthru
        _
      %p152 = scmp.lt.s32.totalorder %s13, 2
      // Predicated region
      $region25: #{tpu_custom_call.1} parent=5 // pred_check
        %p153 = pneg %p152
      $region26: #{tpu_custom_call.1} parent=5 // pred_check_branch
        %155 = sbr.rel (%p153) target = $region28
      $region27: #{tpu_custom_call.1} parent=5 // pred_region
        // Predicated region
        $region29: #{tpu_custom_call.1} parent=27 // pred_check
          %p156 = pneg %p33
        $region30: #{tpu_custom_call.1} parent=27 // pred_check_branch
          %158 = sbr.rel (%p156) target = $region32
        $region31: #{tpu_custom_call.1} parent=27 // pred_region
          %p159 = scmp.lt.s32.totalorder %s13, 1
          %s160 = scalar_select %p159, %s13, 1
          %s161 = smul.addr %s160, 204
          %s162 = smul.addr %s161, 8
          %s163 = scalar_lea.vmem %s0, %s162
        $region32: #{tpu_custom_call.1} parent=27 // pred_fallthru
          _
      $region28: #{tpu_custom_call.1} parent=5 // pred_fallthru
        _
      %p164 = scmp.le.s32.totalorder 1, %s13
      %p165 = scmp.lt.s32.totalorder %s13, 3
      %p166 = pnand %p164, %p165
      %p167 = pneg %p166
      // Predicated region
      $region33: #{tpu_custom_call.1} parent=5 // pred_check
        _
      $region34: #{tpu_custom_call.1} parent=5 // pred_check_branch
        %169 = sbr.rel (%p166) target = $region36
      $region35: #{tpu_custom_call.1} parent=5 // pred_region
        %s170 = ssub.s32 %s13, 1
        %p171 = scmp.lt.s32.totalorder %s18, 1
        %s172 = scalar_select %p171, %s18, 1
        %s173 = smul.addr %s172, 204
        %s174 = smul.addr %s173, 8
        %s175 = scalar_lea.vmem %s0, %s174
        %p176 = pneg %p39
        %p177 = pneg %p36
        %p178 = pneg %p60
        %p179 = pneg %p57
        %p180 = pneg %p81
        %p181 = pneg %p78
        %p182 = pneg %p102
        %p183 = pneg %p99
        %p184 = pneg %p128
        %p185 = pneg %p125
        %s186 = sand.u32 %s115, 1
        %s187 = scalar_lea.sflag [#allocation3], %s186
        %s188 = sand.u32 %s115, 1
        %s189 = smul.addr %s188, 128
        %s190 = scalar_lea.vmem [#allocation2], %s189
        %p191 = scmp.lt.s32.totalorder %s18, 1
        %s192 = scalar_select %p191, %s18, 1
        %s193 = smul.addr %s192, 204
        %s194 = smul.addr %s193, 8
        %s195 = scalar_lea.vmem %s0, %s194
        %v196 = vld [vmem:[%s195] sm:$0xff]
        %v197 = vld [vmem:[%s195 + $0x8] sm:$0xff]
        %v198 = vld [vmem:[%s195 + $0x18] sm:$0xff]
        %v199 = vld [vmem:[%s195 + $0x20] sm:$0xff]
        %v200 = vld [vmem:[%s195 + $0x30] sm:$0xff]
        %v201 = vld [vmem:[%s195 + $0x38] sm:$0xff]
        %v202 = vld [vmem:[%s195 + $0x48] sm:$0xff]
        %v203 = vld [vmem:[%s195 + $0x50] sm:$0xff]
        %v204 = vld [vmem:[%s195 + $0x60] sm:$0xff]
        %v205 = vld [vmem:[%s195 + $0x68] sm:$0xff]
        %v206 = vld [vmem:[%s195 + $0x78] sm:$0xff]
        %v207 = vld [vmem:[%s195 + $0x80] sm:$0xff]
        %v208 = vld [vmem:[%s195 + $0x90] sm:$0xff]
        %v209 = vld [vmem:[%s195 + $0x98] sm:$0xff]
        %v210 = vld [vmem:[%s195 + $0xa8] sm:$0xff]
        %v211 = vld [vmem:[%s195 + $0xb0] sm:$0xff]
        %v212 = vld [vmem:[%s195 + $0xc0] sm:$0xff]
        %v213 = vld [vmem:[%s195 + $0xc8] sm:$0xff]
        %v214 = vld [vmem:[%s195 + $0xd8] sm:$0xff]
        %v215 = vld [vmem:[%s195 + $0xe0] sm:$0xff]
        %v216 = vld [vmem:[%s195 + $0xf0] sm:$0xff]
        %v217 = vld [vmem:[%s195 + $0xf8] sm:$0xff]
        %v218 = vld [vmem:[%s195 + $0x108] sm:$0xff]
        %v219 = vld [vmem:[%s195 + $0x110] sm:$0xff]
        %v220 = vld [vmem:[%s195 + $0x120] sm:$0xff]
        %v221 = vld [vmem:[%s195 + $0x128] sm:$0xff]
        %v222 = vld [vmem:[%s195 + $0x138] sm:$0xff]
        %v223 = vld [vmem:[%s195 + $0x140] sm:$0xff]
        %v224 = vld [vmem:[%s195 + $0x150] sm:$0xff]
        %v225 = vld [vmem:[%s195 + $0x158] sm:$0xff]
        %v226 = vld [vmem:[%s195 + $0x168] sm:$0xff]
        %v227 = vld [vmem:[%s195 + $0x170] sm:$0xff]
        %v228 = vld [vmem:[%s1] sm:$0x1]
        %230 = vset.pattern.permute.xlu0 0
        %231 = vperm.xlu0 %230, %v196
        %v232 = vpop.permute.xlu0 %231
        %235 = vset.pattern.permute.xlu0 0
        %236 = vperm.xlu0 %235, %v197
        %v237 = vpop.permute.xlu0 %236
        %240 = vset.pattern.permute.xlu0 0
        %241 = vperm.xlu0 %240, %v198
        %v242 = vpop.permute.xlu0 %241
        %245 = vset.pattern.permute.xlu0 0
        %246 = vperm.xlu0 %245, %v199
        %v247 = vpop.permute.xlu0 %246
        %250 = vset.pattern.permute.xlu0 0
        %251 = vperm.xlu0 %250, %v200
        %v252 = vpop.permute.xlu0 %251
        %255 = vset.pattern.permute.xlu0 0
        %256 = vperm.xlu0 %255, %v201
        %v257 = vpop.permute.xlu0 %256
        %260 = vset.pattern.permute.xlu0 0
        %261 = vperm.xlu0 %260, %v202
        %v262 = vpop.permute.xlu0 %261
        %265 = vset.pattern.permute.xlu0 0
        %266 = vperm.xlu0 %265, %v203
        %v267 = vpop.permute.xlu0 %266
        %270 = vset.pattern.permute.xlu0 0
        %271 = vperm.xlu0 %270, %v204
        %v272 = vpop.permute.xlu0 %271
        %275 = vset.pattern.permute.xlu0 0
        %276 = vperm.xlu0 %275, %v205
        %v277 = vpop.permute.xlu0 %276
        %280 = vset.pattern.permute.xlu0 0
        %281 = vperm.xlu0 %280, %v206
        %v282 = vpop.permute.xlu0 %281
        %285 = vset.pattern.permute.xlu0 0
        %286 = vperm.xlu0 %285, %v207
        %v287 = vpop.permute.xlu0 %286
        %290 = vset.pattern.permute.xlu0 0
        %291 = vperm.xlu0 %290, %v208
        %v292 = vpop.permute.xlu0 %291
        %295 = vset.pattern.permute.xlu0 0
        %296 = vperm.xlu0 %295, %v209
        %v297 = vpop.permute.xlu0 %296
        %300 = vset.pattern.permute.xlu0 0
        %301 = vperm.xlu0 %300, %v210
        %v302 = vpop.permute.xlu0 %301
        %305 = vset.pattern.permute.xlu0 0
        %306 = vperm.xlu0 %305, %v211
        %v307 = vpop.permute.xlu0 %306
        %310 = vset.pattern.permute.xlu0 0
        %311 = vperm.xlu0 %310, %v212
        %v312 = vpop.permute.xlu0 %311
        %315 = vset.pattern.permute.xlu0 0
        %316 = vperm.xlu0 %315, %v213
        %v317 = vpop.permute.xlu0 %316
        %320 = vset.pattern.permute.xlu0 0
        %321 = vperm.xlu0 %320, %v214
        %v322 = vpop.permute.xlu0 %321
        %325 = vset.pattern.permute.xlu0 0
        %326 = vperm.xlu0 %325, %v215
        %v327 = vpop.permute.xlu0 %326
        %330 = vset.pattern.permute.xlu0 0
        %331 = vperm.xlu0 %330, %v216
        %v332 = vpop.permute.xlu0 %331
        %335 = vset.pattern.permute.xlu0 0
        %336 = vperm.xlu0 %335, %v217
        %v337 = vpop.permute.xlu0 %336
        %340 = vset.pattern.permute.xlu0 0
        %341 = vperm.xlu0 %340, %v218
        %v342 = vpop.permute.xlu0 %341
        %345 = vset.pattern.permute.xlu0 0
        %346 = vperm.xlu0 %345, %v219
        %v347 = vpop.permute.xlu0 %346
        %350 = vset.pattern.permute.xlu0 0
        %351 = vperm.xlu0 %350, %v220
        %v352 = vpop.permute.xlu0 %351
        %355 = vset.pattern.permute.xlu0 0
        %356 = vperm.xlu0 %355, %v221
        %v357 = vpop.permute.xlu0 %356
        %360 = vset.pattern.permute.xlu0 0
        %361 = vperm.xlu0 %360, %v222
        %v362 = vpop.permute.xlu0 %361
        %365 = vset.pattern.permute.xlu0 0
        %366 = vperm.xlu0 %365, %v223
        %v367 = vpop.permute.xlu0 %366
        %370 = vset.pattern.permute.xlu0 0
        %371 = vperm.xlu0 %370, %v224
        %v372 = vpop.permute.xlu0 %371
        %375 = vset.pattern.permute.xlu0 0
        %376 = vperm.xlu0 %375, %v225
        %v377 = vpop.permute.xlu0 %376
        %380 = vset.pattern.permute.xlu0 0
        %381 = vperm.xlu0 %380, %v226
        %v382 = vpop.permute.xlu0 %381
        %385 = vset.pattern.permute.xlu0 0
        %386 = vperm.xlu0 %385, %v227
        %v387 = vpop.permute.xlu0 %386
        %v389 = vlaneseq
        %v390 = vshrl.u32 %v389, 7
        %v391 = vsub.s32 0, %v390
        %v392 = vrot.slane %v228, %v391
        %v393 = vmul.f32 %v232, %v392
        %v394 = vmul.f32 %v237, %v392
        %v395 = vmul.f32 %v242, %v392
        %v396 = vmul.f32 %v247, %v392
        %v397 = vmul.f32 %v252, %v392
        %v398 = vmul.f32 %v257, %v392
        %v399 = vmul.f32 %v262, %v392
        %v400 = vmul.f32 %v267, %v392
        %v401 = vmul.f32 %v272, %v392
        %v402 = vmul.f32 %v277, %v392
        %v403 = vmul.f32 %v282, %v392
        %v404 = vmul.f32 %v287, %v392
        %v405 = vmul.f32 %v292, %v392
        %v406 = vmul.f32 %v297, %v392
        %v407 = vmul.f32 %v302, %v392
        %v408 = vmul.f32 %v307, %v392
        %v409 = vmul.f32 %v312, %v392
        %v410 = vmul.f32 %v317, %v392
        %v411 = vmul.f32 %v322, %v392
        %v412 = vmul.f32 %v327, %v392
        %v413 = vmul.f32 %v332, %v392
        %v414 = vmul.f32 %v337, %v392
        %v415 = vmul.f32 %v342, %v392
        %v416 = vmul.f32 %v347, %v392
        %v417 = vmul.f32 %v352, %v392
        %v418 = vmul.f32 %v357, %v392
        %v419 = vmul.f32 %v362, %v392
        %v420 = vmul.f32 %v367, %v392
        %v421 = vmul.f32 %v372, %v392
        %v422 = vmul.f32 %v377, %v392
        %v423 = vmul.f32 %v382, %v392
        %v424 = vmul.f32 %v387, %v392
        %v425 = vadd.f32 %v393, 0.0
        %v426 = vadd.f32 %v394, 0.0
        %v427 = vadd.f32 %v395, 0.0
        %v428 = vadd.f32 %v396, 0.0
        %v429 = vadd.f32 %v397, 0.0
        %v430 = vadd.f32 %v398, 0.0
        %v431 = vadd.f32 %v399, 0.0
        %v432 = vadd.f32 %v400, 0.0
        %v433 = vadd.f32 %v401, 0.0
        %v434 = vadd.f32 %v402, 0.0
        %v435 = vadd.f32 %v403, 0.0
        %v436 = vadd.f32 %v404, 0.0
        %v437 = vadd.f32 %v405, 0.0
        %v438 = vadd.f32 %v406, 0.0
        %v439 = vadd.f32 %v407, 0.0
        %v440 = vadd.f32 %v408, 0.0
        %v441 = vadd.f32 %v409, 0.0
        %v442 = vadd.f32 %v410, 0.0
        %v443 = vadd.f32 %v411, 0.0
        %v444 = vadd.f32 %v412, 0.0
        %v445 = vadd.f32 %v413, 0.0
        %v446 = vadd.f32 %v414, 0.0
        %v447 = vadd.f32 %v415, 0.0
        %v448 = vadd.f32 %v416, 0.0
        %v449 = vadd.f32 %v417, 0.0
        %v450 = vadd.f32 %v418, 0.0
        %v451 = vadd.f32 %v419, 0.0
        %v452 = vadd.f32 %v420, 0.0
        %v453 = vadd.f32 %v421, 0.0
        %v454 = vadd.f32 %v422, 0.0
        %v455 = vadd.f32 %v423, 0.0
        %v456 = vadd.f32 %v424, 0.0
        %s457 = scalar_lea.vmem %s195, 408
        %v458 = vld [vmem:[%s457] sm:$0xff]
        %v459 = vld [vmem:[%s457 + $0x8] sm:$0xff]
        %v460 = vld [vmem:[%s457 + $0x18] sm:$0xff]
        %v461 = vld [vmem:[%s457 + $0x20] sm:$0xff]
        %v462 = vld [vmem:[%s457 + $0x30] sm:$0xff]
        %v463 = vld [vmem:[%s457 + $0x38] sm:$0xff]
        %v464 = vld [vmem:[%s457 + $0x48] sm:$0xff]
        %v465 = vld [vmem:[%s457 + $0x50] sm:$0xff]
        %v466 = vld [vmem:[%s457 + $0x60] sm:$0xff]
        %v467 = vld [vmem:[%s457 + $0x68] sm:$0xff]
        %v468 = vld [vmem:[%s457 + $0x78] sm:$0xff]
        %v469 = vld [vmem:[%s457 + $0x80] sm:$0xff]
        %v470 = vld [vmem:[%s457 + $0x90] sm:$0xff]
        %v471 = vld [vmem:[%s457 + $0x98] sm:$0xff]
        %v472 = vld [vmem:[%s457 + $0xa8] sm:$0xff]
        %v473 = vld [vmem:[%s457 + $0xb0] sm:$0xff]
        %v474 = vld [vmem:[%s457 + $0xc0] sm:$0xff]
        %v475 = vld [vmem:[%s457 + $0xc8] sm:$0xff]
        %v476 = vld [vmem:[%s457 + $0xd8] sm:$0xff]
        %v477 = vld [vmem:[%s457 + $0xe0] sm:$0xff]
        %v478 = vld [vmem:[%s457 + $0xf0] sm:$0xff]
        %v479 = vld [vmem:[%s457 + $0xf8] sm:$0xff]
        %v480 = vld [vmem:[%s457 + $0x108] sm:$0xff]
        %v481 = vld [vmem:[%s457 + $0x110] sm:$0xff]
        %v482 = vld [vmem:[%s457 + $0x120] sm:$0xff]
        %v483 = vld [vmem:[%s457 + $0x128] sm:$0xff]
        %v484 = vld [vmem:[%s457 + $0x138] sm:$0xff]
        %v485 = vld [vmem:[%s457 + $0x140] sm:$0xff]
        %v486 = vld [vmem:[%s457 + $0x150] sm:$0xff]
        %v487 = vld [vmem:[%s457 + $0x158] sm:$0xff]
        %v488 = vld [vmem:[%s457 + $0x168] sm:$0xff]
        %v489 = vld [vmem:[%s457 + $0x170] sm:$0xff]
        %v490 = vld [vmem:[%s1 + $0x1] sm:$0x1]
        %492 = vset.pattern.permute.xlu0 0
        %493 = vperm.xlu0 %492, %v458
        %v494 = vpop.permute.xlu0 %493
        %497 = vset.pattern.permute.xlu0 0
        %498 = vperm.xlu0 %497, %v459
        %v499 = vpop.permute.xlu0 %498
        %502 = vset.pattern.permute.xlu0 0
        %503 = vperm.xlu0 %502, %v460
        %v504 = vpop.permute.xlu0 %503
        %507 = vset.pattern.permute.xlu0 0
        %508 = vperm.xlu0 %507, %v461
        %v509 = vpop.permute.xlu0 %508
        %512 = vset.pattern.permute.xlu0 0
        %513 = vperm.xlu0 %512, %v462
        %v514 = vpop.permute.xlu0 %513
        %517 = vset.pattern.permute.xlu0 0
        %518 = vperm.xlu0 %517, %v463
        %v519 = vpop.permute.xlu0 %518
        %522 = vset.pattern.permute.xlu0 0
        %523 = vperm.xlu0 %522, %v464
        %v524 = vpop.permute.xlu0 %523
        %527 = vset.pattern.permute.xlu0 0
        %528 = vperm.xlu0 %527, %v465
        %v529 = vpop.permute.xlu0 %528
        %532 = vset.pattern.permute.xlu0 0
        %533 = vperm.xlu0 %532, %v466
        %v534 = vpop.permute.xlu0 %533
        %537 = vset.pattern.permute.xlu0 0
        %538 = vperm.xlu0 %537, %v467
        %v539 = vpop.permute.xlu0 %538
        %542 = vset.pattern.permute.xlu0 0
        %543 = vperm.xlu0 %542, %v468
        %v544 = vpop.permute.xlu0 %543
        %547 = vset.pattern.permute.xlu0 0
        %548 = vperm.xlu0 %547, %v469
        %v549 = vpop.permute.xlu0 %548
        %552 = vset.pattern.permute.xlu0 0
        %553 = vperm.xlu0 %552, %v470
        %v554 = vpop.permute.xlu0 %553
        %557 = vset.pattern.permute.xlu0 0
        %558 = vperm.xlu0 %557, %v471
        %v559 = vpop.permute.xlu0 %558
        %562 = vset.pattern.permute.xlu0 0
        %563 = vperm.xlu0 %562, %v472
        %v564 = vpop.permute.xlu0 %563
        %567 = vset.pattern.permute.xlu0 0
        %568 = vperm.xlu0 %567, %v473
        %v569 = vpop.permute.xlu0 %568
        %572 = vset.pattern.permute.xlu0 0
        %573 = vperm.xlu0 %572, %v474
        %v574 = vpop.permute.xlu0 %573
        %577 = vset.pattern.permute.xlu0 0
        %578 = vperm.xlu0 %577, %v475
        %v579 = vpop.permute.xlu0 %578
        %582 = vset.pattern.permute.xlu0 0
        %583 = vperm.xlu0 %582, %v476
        %v584 = vpop.permute.xlu0 %583
        %587 = vset.pattern.permute.xlu0 0
        %588 = vperm.xlu0 %587, %v477
        %v589 = vpop.permute.xlu0 %588
        %592 = vset.pattern.permute.xlu0 0
        %593 = vperm.xlu0 %592, %v478
        %v594 = vpop.permute.xlu0 %593
        %597 = vset.pattern.permute.xlu0 0
        %598 = vperm.xlu0 %597, %v479
        %v599 = vpop.permute.xlu0 %598
        %602 = vset.pattern.permute.xlu0 0
        %603 = vperm.xlu0 %602, %v480
        %v604 = vpop.permute.xlu0 %603
        %607 = vset.pattern.permute.xlu0 0
        %608 = vperm.xlu0 %607, %v481
        %v609 = vpop.permute.xlu0 %608
        %612 = vset.pattern.permute.xlu0 0
        %613 = vperm.xlu0 %612, %v482
        %v614 = vpop.permute.xlu0 %613
        %617 = vset.pattern.permute.xlu0 0
        %618 = vperm.xlu0 %617, %v483
        %v619 = vpop.permute.xlu0 %618
        %622 = vset.pattern.permute.xlu0 0
        %623 = vperm.xlu0 %622, %v484
        %v624 = vpop.permute.xlu0 %623
        %627 = vset.pattern.permute.xlu0 0
        %628 = vperm.xlu0 %627, %v485
        %v629 = vpop.permute.xlu0 %628
        %632 = vset.pattern.permute.xlu0 0
        %633 = vperm.xlu0 %632, %v486
        %v634 = vpop.permute.xlu0 %633
        %637 = vset.pattern.permute.xlu0 0
        %638 = vperm.xlu0 %637, %v487
        %v639 = vpop.permute.xlu0 %638
        %642 = vset.pattern.permute.xlu0 0
        %643 = vperm.xlu0 %642, %v488
        %v644 = vpop.permute.xlu0 %643
        %647 = vset.pattern.permute.xlu0 0
        %648 = vperm.xlu0 %647, %v489
        %v649 = vpop.permute.xlu0 %648
        %v651 = vlaneseq
        %v652 = vshrl.u32 %v651, 7
        %v653 = vsub.s32 0, %v652
        %v654 = vrot.slane %v490, %v653
        %v655 = vmul.f32 %v494, %v654
        %v656 = vmul.f32 %v499, %v654
        %v657 = vmul.f32 %v504, %v654
        %v658 = vmul.f32 %v509, %v654
        %v659 = vmul.f32 %v514, %v654
        %v660 = vmul.f32 %v519, %v654
        %v661 = vmul.f32 %v524, %v654
        %v662 = vmul.f32 %v529, %v654
        %v663 = vmul.f32 %v534, %v654
        %v664 = vmul.f32 %v539, %v654
        %v665 = vmul.f32 %v544, %v654
        %v666 = vmul.f32 %v549, %v654
        %v667 = vmul.f32 %v554, %v654
        %v668 = vmul.f32 %v559, %v654
        %v669 = vmul.f32 %v564, %v654
        %v670 = vmul.f32 %v569, %v654
        %v671 = vmul.f32 %v574, %v654
        %v672 = vmul.f32 %v579, %v654
        %v673 = vmul.f32 %v584, %v654
        %v674 = vmul.f32 %v589, %v654
        %v675 = vmul.f32 %v594, %v654
        %v676 = vmul.f32 %v599, %v654
        %v677 = vmul.f32 %v604, %v654
        %v678 = vmul.f32 %v609, %v654
        %v679 = vmul.f32 %v614, %v654
        %v680 = vmul.f32 %v619, %v654
        %v681 = vmul.f32 %v624, %v654
        %v682 = vmul.f32 %v629, %v654
        %v683 = vmul.f32 %v634, %v654
        %v684 = vmul.f32 %v639, %v654
        %v685 = vmul.f32 %v644, %v654
        %v686 = vmul.f32 %v649, %v654
        %v687 = vadd.f32 %v425, %v655
        %v688 = vadd.f32 %v426, %v656
        %v689 = vadd.f32 %v427, %v657
        %v690 = vadd.f32 %v428, %v658
        %v691 = vadd.f32 %v429, %v659
        %v692 = vadd.f32 %v430, %v660
        %v693 = vadd.f32 %v431, %v661
        %v694 = vadd.f32 %v432, %v662
        %v695 = vadd.f32 %v433, %v663
        %v696 = vadd.f32 %v434, %v664
        %v697 = vadd.f32 %v435, %v665
        %v698 = vadd.f32 %v436, %v666
        %v699 = vadd.f32 %v437, %v667
        %v700 = vadd.f32 %v438, %v668
        %v701 = vadd.f32 %v439, %v669
        %v702 = vadd.f32 %v440, %v670
        %v703 = vadd.f32 %v441, %v671
        %v704 = vadd.f32 %v442, %v672
        %v705 = vadd.f32 %v443, %v673
        %v706 = vadd.f32 %v444, %v674
        %v707 = vadd.f32 %v445, %v675
        %v708 = vadd.f32 %v446, %v676
        %v709 = vadd.f32 %v447, %v677
        %v710 = vadd.f32 %v448, %v678
        %v711 = vadd.f32 %v449, %v679
        %v712 = vadd.f32 %v450, %v680
        %v713 = vadd.f32 %v451, %v681
        %v714 = vadd.f32 %v452, %v682
        %v715 = vadd.f32 %v453, %v683
        %v716 = vadd.f32 %v454, %v684
        %v717 = vadd.f32 %v455, %v685
        %v718 = vadd.f32 %v456, %v686
        %v719 = vld [vmem:[%s195 + $0x1] sm:$0xff]
        %v720 = vld [vmem:[%s195 + $0x9] sm:$0xff]
        %v721 = vld [vmem:[%s195 + $0x19] sm:$0xff]
        %v722 = vld [vmem:[%s195 + $0x21] sm:$0xff]
        %v723 = vld [vmem:[%s195 + $0x31] sm:$0xff]
        %v724 = vld [vmem:[%s195 + $0x39] sm:$0xff]
        %v725 = vld [vmem:[%s195 + $0x49] sm:$0xff]
        %v726 = vld [vmem:[%s195 + $0x51] sm:$0xff]
        %v727 = vld [vmem:[%s195 + $0x61] sm:$0xff]
        %v728 = vld [vmem:[%s195 + $0x69] sm:$0xff]
        %v729 = vld [vmem:[%s195 + $0x79] sm:$0xff]
        %v730 = vld [vmem:[%s195 + $0x81] sm:$0xff]
        %v731 = vld [vmem:[%s195 + $0x91] sm:$0xff]
        %v732 = vld [vmem:[%s195 + $0x99] sm:$0xff]
        %v733 = vld [vmem:[%s195 + $0xa9] sm:$0xff]
        %v734 = vld [vmem:[%s195 + $0xb1] sm:$0xff]
        %v735 = vld [vmem:[%s195 + $0xc1] sm:$0xff]
        %v736 = vld [vmem:[%s195 + $0xc9] sm:$0xff]
        %v737 = vld [vmem:[%s195 + $0xd9] sm:$0xff]
        %v738 = vld [vmem:[%s195 + $0xe1] sm:$0xff]
        %v739 = vld [vmem:[%s195 + $0xf1] sm:$0xff]
        %v740 = vld [vmem:[%s195 + $0xf9] sm:$0xff]
        %v741 = vld [vmem:[%s195 + $0x109] sm:$0xff]
        %v742 = vld [vmem:[%s195 + $0x111] sm:$0xff]
        %v743 = vld [vmem:[%s195 + $0x121] sm:$0xff]
        %v744 = vld [vmem:[%s195 + $0x129] sm:$0xff]
        %v745 = vld [vmem:[%s195 + $0x139] sm:$0xff]
        %v746 = vld [vmem:[%s195 + $0x141] sm:$0xff]
        %v747 = vld [vmem:[%s195 + $0x151] sm:$0xff]
        %v748 = vld [vmem:[%s195 + $0x159] sm:$0xff]
        %v749 = vld [vmem:[%s195 + $0x169] sm:$0xff]
        %v750 = vld [vmem:[%s195 + $0x171] sm:$0xff]
        %v751 = vld [vmem:[%s1 + $0x2] sm:$0x1]
        %753 = vset.pattern.permute.xlu0 0
        %754 = vperm.xlu0 %753, %v719
        %v755 = vpop.permute.xlu0 %754
        %758 = vset.pattern.permute.xlu0 0
        %759 = vperm.xlu0 %758, %v720
        %v760 = vpop.permute.xlu0 %759
        %763 = vset.pattern.permute.xlu0 0
        %764 = vperm.xlu0 %763, %v721
        %v765 = vpop.permute.xlu0 %764
        %768 = vset.pattern.permute.xlu0 0
        %769 = vperm.xlu0 %768, %v722
        %v770 = vpop.permute.xlu0 %769
        %773 = vset.pattern.permute.xlu0 0
        %774 = vperm.xlu0 %773, %v723
        %v775 = vpop.permute.xlu0 %774
        %778 = vset.pattern.permute.xlu0 0
        %779 = vperm.xlu0 %778, %v724
        %v780 = vpop.permute.xlu0 %779
        %783 = vset.pattern.permute.xlu0 0
        %784 = vperm.xlu0 %783, %v725
        %v785 = vpop.permute.xlu0 %784
        %788 = vset.pattern.permute.xlu0 0
        %789 = vperm.xlu0 %788, %v726
        %v790 = vpop.permute.xlu0 %789
        %793 = vset.pattern.permute.xlu0 0
        %794 = vperm.xlu0 %793, %v727
        %v795 = vpop.permute.xlu0 %794
        %798 = vset.pattern.permute.xlu0 0
        %799 = vperm.xlu0 %798, %v728
        %v800 = vpop.permute.xlu0 %799
        %803 = vset.pattern.permute.xlu0 0
        %804 = vperm.xlu0 %803, %v729
        %v805 = vpop.permute.xlu0 %804
        %808 = vset.pattern.permute.xlu0 0
        %809 = vperm.xlu0 %808, %v730
        %v810 = vpop.permute.xlu0 %809
        %813 = vset.pattern.permute.xlu0 0
        %814 = vperm.xlu0 %813, %v731
        %v815 = vpop.permute.xlu0 %814
        %818 = vset.pattern.permute.xlu0 0
        %819 = vperm.xlu0 %818, %v732
        %v820 = vpop.permute.xlu0 %819
        %823 = vset.pattern.permute.xlu0 0
        %824 = vperm.xlu0 %823, %v733
        %v825 = vpop.permute.xlu0 %824
        %828 = vset.pattern.permute.xlu0 0
        %829 = vperm.xlu0 %828, %v734
        %v830 = vpop.permute.xlu0 %829
        %833 = vset.pattern.permute.xlu0 0
        %834 = vperm.xlu0 %833, %v735
        %v835 = vpop.permute.xlu0 %834
        %838 = vset.pattern.permute.xlu0 0
        %839 = vperm.xlu0 %838, %v736
        %v840 = vpop.permute.xlu0 %839
        %843 = vset.pattern.permute.xlu0 0
        %844 = vperm.xlu0 %843, %v737
        %v845 = vpop.permute.xlu0 %844
        %848 = vset.pattern.permute.xlu0 0
        %849 = vperm.xlu0 %848, %v738
        %v850 = vpop.permute.xlu0 %849
        %853 = vset.pattern.permute.xlu0 0
        %854 = vperm.xlu0 %853, %v739
        %v855 = vpop.permute.xlu0 %854
        %858 = vset.pattern.permute.xlu0 0
        %859 = vperm.xlu0 %858, %v740
        %v860 = vpop.permute.xlu0 %859
        %863 = vset.pattern.permute.xlu0 0
        %864 = vperm.xlu0 %863, %v741
        %v865 = vpop.permute.xlu0 %864
        %868 = vset.pattern.permute.xlu0 0
        %869 = vperm.xlu0 %868, %v742
        %v870 = vpop.permute.xlu0 %869
        %873 = vset.pattern.permute.xlu0 0
        %874 = vperm.xlu0 %873, %v743
        %v875 = vpop.permute.xlu0 %874
        %878 = vset.pattern.permute.xlu0 0
        %879 = vperm.xlu0 %878, %v744
        %v880 = vpop.permute.xlu0 %879
        %883 = vset.pattern.permute.xlu0 0
        %884 = vperm.xlu0 %883, %v745
        %v885 = vpop.permute.xlu0 %884
        %888 = vset.pattern.permute.xlu0 0
        %889 = vperm.xlu0 %888, %v746
        %v890 = vpop.permute.xlu0 %889
        %893 = vset.pattern.permute.xlu0 0
        %894 = vperm.xlu0 %893, %v747
        %v895 = vpop.permute.xlu0 %894
        %898 = vset.pattern.permute.xlu0 0
        %899 = vperm.xlu0 %898, %v748
        %v900 = vpop.permute.xlu0 %899
        %903 = vset.pattern.permute.xlu0 0
        %904 = vperm.xlu0 %903, %v749
        %v905 = vpop.permute.xlu0 %904
        %908 = vset.pattern.permute.xlu0 0
        %909 = vperm.xlu0 %908, %v750
        %v910 = vpop.permute.xlu0 %909
        %v912 = vlaneseq
        %v913 = vshrl.u32 %v912, 7
        %v914 = vsub.s32 0, %v913
        %v915 = vrot.slane %v751, %v914
        %v916 = vmul.f32 %v755, %v915
        %v917 = vmul.f32 %v760, %v915
        %v918 = vmul.f32 %v765, %v915
        %v919 = vmul.f32 %v770, %v915
        %v920 = vmul.f32 %v775, %v915
        %v921 = vmul.f32 %v780, %v915
        %v922 = vmul.f32 %v785, %v915
        %v923 = vmul.f32 %v790, %v915
        %v924 = vmul.f32 %v795, %v915
        %v925 = vmul.f32 %v800, %v915
        %v926 = vmul.f32 %v805, %v915
        %v927 = vmul.f32 %v810, %v915
        %v928 = vmul.f32 %v815, %v915
        %v929 = vmul.f32 %v820, %v915
        %v930 = vmul.f32 %v825, %v915
        %v931 = vmul.f32 %v830, %v915
        %v932 = vmul.f32 %v835, %v915
        %v933 = vmul.f32 %v840, %v915
        %v934 = vmul.f32 %v845, %v915
        %v935 = vmul.f32 %v850, %v915
        %v936 = vmul.f32 %v855, %v915
        %v937 = vmul.f32 %v860, %v915
        %v938 = vmul.f32 %v865, %v915
        %v939 = vmul.f32 %v870, %v915
        %v940 = vmul.f32 %v875, %v915
        %v941 = vmul.f32 %v880, %v915
        %v942 = vmul.f32 %v885, %v915
        %v943 = vmul.f32 %v890, %v915
        %v944 = vmul.f32 %v895, %v915
        %v945 = vmul.f32 %v900, %v915
        %v946 = vmul.f32 %v905, %v915
        %v947 = vmul.f32 %v910, %v915
        %v948 = vadd.f32 %v687, %v916
        %v949 = vadd.f32 %v688, %v917
        %v950 = vadd.f32 %v689, %v918
        %v951 = vadd.f32 %v690, %v919
        %v952 = vadd.f32 %v691, %v920
        %v953 = vadd.f32 %v692, %v921
        %v954 = vadd.f32 %v693, %v922
        %v955 = vadd.f32 %v694, %v923
        %v956 = vadd.f32 %v695, %v924
        %v957 = vadd.f32 %v696, %v925
        %v958 = vadd.f32 %v697, %v926
        %v959 = vadd.f32 %v698, %v927
        %v960 = vadd.f32 %v699, %v928
        %v961 = vadd.f32 %v700, %v929
        %v962 = vadd.f32 %v701, %v930
        %v963 = vadd.f32 %v702, %v931
        %v964 = vadd.f32 %v703, %v932
        %v965 = vadd.f32 %v704, %v933
        %v966 = vadd.f32 %v705, %v934
        %v967 = vadd.f32 %v706, %v935
        %v968 = vadd.f32 %v707, %v936
        %v969 = vadd.f32 %v708, %v937
        %v970 = vadd.f32 %v709, %v938
        %v971 = vadd.f32 %v710, %v939
        %v972 = vadd.f32 %v711, %v940
        %v973 = vadd.f32 %v712, %v941
        %v974 = vadd.f32 %v713, %v942
        %v975 = vadd.f32 %v714, %v943
        %v976 = vadd.f32 %v715, %v944
        %v977 = vadd.f32 %v716, %v945
        %v978 = vadd.f32 %v717, %v946
        %v979 = vadd.f32 %v718, %v947
        %s980 = scalar_lea.vmem %s195, 816
        %v981 = vld [vmem:[%s980] sm:$0xff]
        %v982 = vld [vmem:[%s980 + $0x8] sm:$0xff]
        %v983 = vld [vmem:[%s980 + $0x18] sm:$0xff]
        %v984 = vld [vmem:[%s980 + $0x20] sm:$0xff]
        %v985 = vld [vmem:[%s980 + $0x30] sm:$0xff]
        %v986 = vld [vmem:[%s980 + $0x38] sm:$0xff]
        %v987 = vld [vmem:[%s980 + $0x48] sm:$0xff]
        %v988 = vld [vmem:[%s980 + $0x50] sm:$0xff]
        %v989 = vld [vmem:[%s980 + $0x60] sm:$0xff]
        %v990 = vld [vmem:[%s980 + $0x68] sm:$0xff]
        %v991 = vld [vmem:[%s980 + $0x78] sm:$0xff]
        %v992 = vld [vmem:[%s980 + $0x80] sm:$0xff]
        %v993 = vld [vmem:[%s980 + $0x90] sm:$0xff]
        %v994 = vld [vmem:[%s980 + $0x98] sm:$0xff]
        %v995 = vld [vmem:[%s980 + $0xa8] sm:$0xff]
        %v996 = vld [vmem:[%s980 + $0xb0] sm:$0xff]
        %v997 = vld [vmem:[%s980 + $0xc0] sm:$0xff]
        %v998 = vld [vmem:[%s980 + $0xc8] sm:$0xff]
        %v999 = vld [vmem:[%s980 + $0xd8] sm:$0xff]
        %v1000 = vld [vmem:[%s980 + $0xe0] sm:$0xff]
        %v1001 = vld [vmem:[%s980 + $0xf0] sm:$0xff]
        %v1002 = vld [vmem:[%s980 + $0xf8] sm:$0xff]
        %v1003 = vld [vmem:[%s980 + $0x108] sm:$0xff]
        %v1004 = vld [vmem:[%s980 + $0x110] sm:$0xff]
        %v1005 = vld [vmem:[%s980 + $0x120] sm:$0xff]
        %v1006 = vld [vmem:[%s980 + $0x128] sm:$0xff]
        %v1007 = vld [vmem:[%s980 + $0x138] sm:$0xff]
        %v1008 = vld [vmem:[%s980 + $0x140] sm:$0xff]
        %v1009 = vld [vmem:[%s980 + $0x150] sm:$0xff]
        %v1010 = vld [vmem:[%s980 + $0x158] sm:$0xff]
        %v1011 = vld [vmem:[%s980 + $0x168] sm:$0xff]
        %v1012 = vld [vmem:[%s980 + $0x170] sm:$0xff]
        %v1013 = vld [vmem:[%s1 + $0x3] sm:$0x1]
        %1015 = vset.pattern.permute.xlu0 0
        %1016 = vperm.xlu0 %1015, %v981
        %v1017 = vpop.permute.xlu0 %1016
        %1020 = vset.pattern.permute.xlu0 0
        %1021 = vperm.xlu0 %1020, %v982
        %v1022 = vpop.permute.xlu0 %1021
        %1025 = vset.pattern.permute.xlu0 0
        %1026 = vperm.xlu0 %1025, %v983
        %v1027 = vpop.permute.xlu0 %1026
        %1030 = vset.pattern.permute.xlu0 0
        %1031 = vperm.xlu0 %1030, %v984
        %v1032 = vpop.permute.xlu0 %1031
        %1035 = vset.pattern.permute.xlu0 0
        %1036 = vperm.xlu0 %1035, %v985
        %v1037 = vpop.permute.xlu0 %1036
        %1040 = vset.pattern.permute.xlu0 0
        %1041 = vperm.xlu0 %1040, %v986
        %v1042 = vpop.permute.xlu0 %1041
        %1045 = vset.pattern.permute.xlu0 0
        %1046 = vperm.xlu0 %1045, %v987
        %v1047 = vpop.permute.xlu0 %1046
        %1050 = vset.pattern.permute.xlu0 0
        %1051 = vperm.xlu0 %1050, %v988
        %v1052 = vpop.permute.xlu0 %1051
        %1055 = vset.pattern.permute.xlu0 0
        %1056 = vperm.xlu0 %1055, %v989
        %v1057 = vpop.permute.xlu0 %1056
        %1060 = vset.pattern.permute.xlu0 0
        %1061 = vperm.xlu0 %1060, %v990
        %v1062 = vpop.permute.xlu0 %1061
        %1065 = vset.pattern.permute.xlu0 0
        %1066 = vperm.xlu0 %1065, %v991
        %v1067 = vpop.permute.xlu0 %1066
        %1070 = vset.pattern.permute.xlu0 0
        %1071 = vperm.xlu0 %1070, %v992
        %v1072 = vpop.permute.xlu0 %1071
        %1075 = vset.pattern.permute.xlu0 0
        %1076 = vperm.xlu0 %1075, %v993
        %v1077 = vpop.permute.xlu0 %1076
        %1080 = vset.pattern.permute.xlu0 0
        %1081 = vperm.xlu0 %1080, %v994
        %v1082 = vpop.permute.xlu0 %1081
        %1085 = vset.pattern.permute.xlu0 0
        %1086 = vperm.xlu0 %1085, %v995
        %v1087 = vpop.permute.xlu0 %1086
        %1090 = vset.pattern.permute.xlu0 0
        %1091 = vperm.xlu0 %1090, %v996
        %v1092 = vpop.permute.xlu0 %1091
        %1095 = vset.pattern.permute.xlu0 0
        %1096 = vperm.xlu0 %1095, %v997
        %v1097 = vpop.permute.xlu0 %1096
        %1100 = vset.pattern.permute.xlu0 0
        %1101 = vperm.xlu0 %1100, %v998
        %v1102 = vpop.permute.xlu0 %1101
        %1105 = vset.pattern.permute.xlu0 0
        %1106 = vperm.xlu0 %1105, %v999
        %v1107 = vpop.permute.xlu0 %1106
        %1110 = vset.pattern.permute.xlu0 0
        %1111 = vperm.xlu0 %1110, %v1000
        %v1112 = vpop.permute.xlu0 %1111
        %1115 = vset.pattern.permute.xlu0 0
        %1116 = vperm.xlu0 %1115, %v1001
        %v1117 = vpop.permute.xlu0 %1116
        %1120 = vset.pattern.permute.xlu0 0
        %1121 = vperm.xlu0 %1120, %v1002
        %v1122 = vpop.permute.xlu0 %1121
        %1125 = vset.pattern.permute.xlu0 0
        %1126 = vperm.xlu0 %1125, %v1003
        %v1127 = vpop.permute.xlu0 %1126
        %1130 = vset.pattern.permute.xlu0 0
        %1131 = vperm.xlu0 %1130, %v1004
        %v1132 = vpop.permute.xlu0 %1131
        %1135 = vset.pattern.permute.xlu0 0
        %1136 = vperm.xlu0 %1135, %v1005
        %v1137 = vpop.permute.xlu0 %1136
        %1140 = vset.pattern.permute.xlu0 0
        %1141 = vperm.xlu0 %1140, %v1006
        %v1142 = vpop.permute.xlu0 %1141
        %1145 = vset.pattern.permute.xlu0 0
        %1146 = vperm.xlu0 %1145, %v1007
        %v1147 = vpop.permute.xlu0 %1146
        %1150 = vset.pattern.permute.xlu0 0
        %1151 = vperm.xlu0 %1150, %v1008
        %v1152 = vpop.permute.xlu0 %1151
        %1155 = vset.pattern.permute.xlu0 0
        %1156 = vperm.xlu0 %1155, %v1009
        %v1157 = vpop.permute.xlu0 %1156
        %1160 = vset.pattern.permute.xlu0 0
        %1161 = vperm.xlu0 %1160, %v1010
        %v1162 = vpop.permute.xlu0 %1161
        %1165 = vset.pattern.permute.xlu0 0
        %1166 = vperm.xlu0 %1165, %v1011
        %v1167 = vpop.permute.xlu0 %1166
        %1170 = vset.pattern.permute.xlu0 0
        %1171 = vperm.xlu0 %1170, %v1012
        %v1172 = vpop.permute.xlu0 %1171
        %v1174 = vlaneseq
        %v1175 = vshrl.u32 %v1174, 7
        %v1176 = vsub.s32 0, %v1175
        %v1177 = vrot.slane %v1013, %v1176
        %v1178 = vmul.f32 %v1017, %v1177
        %v1179 = vmul.f32 %v1022, %v1177
        %v1180 = vmul.f32 %v1027, %v1177
        %v1181 = vmul.f32 %v1032, %v1177
        %v1182 = vmul.f32 %v1037, %v1177
        %v1183 = vmul.f32 %v1042, %v1177
        %v1184 = vmul.f32 %v1047, %v1177
        %v1185 = vmul.f32 %v1052, %v1177
        %v1186 = vmul.f32 %v1057, %v1177
        %v1187 = vmul.f32 %v1062, %v1177
        %v1188 = vmul.f32 %v1067, %v1177
        %v1189 = vmul.f32 %v1072, %v1177
        %v1190 = vmul.f32 %v1077, %v1177
        %v1191 = vmul.f32 %v1082, %v1177
        %v1192 = vmul.f32 %v1087, %v1177
        %v1193 = vmul.f32 %v1092, %v1177
        %v1194 = vmul.f32 %v1097, %v1177
        %v1195 = vmul.f32 %v1102, %v1177
        %v1196 = vmul.f32 %v1107, %v1177
        %v1197 = vmul.f32 %v1112, %v1177
        %v1198 = vmul.f32 %v1117, %v1177
        %v1199 = vmul.f32 %v1122, %v1177
        %v1200 = vmul.f32 %v1127, %v1177
        %v1201 = vmul.f32 %v1132, %v1177
        %v1202 = vmul.f32 %v1137, %v1177
        %v1203 = vmul.f32 %v1142, %v1177
        %v1204 = vmul.f32 %v1147, %v1177
        %v1205 = vmul.f32 %v1152, %v1177
        %v1206 = vmul.f32 %v1157, %v1177
        %v1207 = vmul.f32 %v1162, %v1177
        %v1208 = vmul.f32 %v1167, %v1177
        %v1209 = vmul.f32 %v1172, %v1177
        %v1210 = vadd.f32 %v948, %v1178
        %v1211 = vadd.f32 %v949, %v1179
        %v1212 = vadd.f32 %v950, %v1180
        %v1213 = vadd.f32 %v951, %v1181
        %v1214 = vadd.f32 %v952, %v1182
        %v1215 = vadd.f32 %v953, %v1183
        %v1216 = vadd.f32 %v954, %v1184
        %v1217 = vadd.f32 %v955, %v1185
        %v1218 = vadd.f32 %v956, %v1186
        %v1219 = vadd.f32 %v957, %v1187
        %v1220 = vadd.f32 %v958, %v1188
        %v1221 = vadd.f32 %v959, %v1189
        %v1222 = vadd.f32 %v960, %v1190
        %v1223 = vadd.f32 %v961, %v1191
        %v1224 = vadd.f32 %v962, %v1192
        %v1225 = vadd.f32 %v963, %v1193
        %v1226 = vadd.f32 %v964, %v1194
        %v1227 = vadd.f32 %v965, %v1195
        %v1228 = vadd.f32 %v966, %v1196
        %v1229 = vadd.f32 %v967, %v1197
        %v1230 = vadd.f32 %v968, %v1198
        %v1231 = vadd.f32 %v969, %v1199
        %v1232 = vadd.f32 %v970, %v1200
        %v1233 = vadd.f32 %v971, %v1201
        %v1234 = vadd.f32 %v972, %v1202
        %v1235 = vadd.f32 %v973, %v1203
        %v1236 = vadd.f32 %v974, %v1204
        %v1237 = vadd.f32 %v975, %v1205
        %v1238 = vadd.f32 %v976, %v1206
        %v1239 = vadd.f32 %v977, %v1207
        %v1240 = vadd.f32 %v978, %v1208
        %v1241 = vadd.f32 %v979, %v1209
        %s1242 = scalar_lea.vmem %s195, 1224
        %v1243 = vld [vmem:[%s1242] sm:$0xff]
        %v1244 = vld [vmem:[%s1242 + $0x8] sm:$0xff]
        %v1245 = vld [vmem:[%s1242 + $0x18] sm:$0xff]
        %v1246 = vld [vmem:[%s1242 + $0x20] sm:$0xff]
        %v1247 = vld [vmem:[%s1242 + $0x30] sm:$0xff]
        %v1248 = vld [vmem:[%s1242 + $0x38] sm:$0xff]
        %v1249 = vld [vmem:[%s1242 + $0x48] sm:$0xff]
        %v1250 = vld [vmem:[%s1242 + $0x50] sm:$0xff]
        %v1251 = vld [vmem:[%s1242 + $0x60] sm:$0xff]
        %v1252 = vld [vmem:[%s1242 + $0x68] sm:$0xff]
        %v1253 = vld [vmem:[%s1242 + $0x78] sm:$0xff]
        %v1254 = vld [vmem:[%s1242 + $0x80] sm:$0xff]
        %v1255 = vld [vmem:[%s1242 + $0x90] sm:$0xff]
        %v1256 = vld [vmem:[%s1242 + $0x98] sm:$0xff]
        %v1257 = vld [vmem:[%s1242 + $0xa8] sm:$0xff]
        %v1258 = vld [vmem:[%s1242 + $0xb0] sm:$0xff]
        %v1259 = vld [vmem:[%s1242 + $0xc0] sm:$0xff]
        %v1260 = vld [vmem:[%s1242 + $0xc8] sm:$0xff]
        %v1261 = vld [vmem:[%s1242 + $0xd8] sm:$0xff]
        %v1262 = vld [vmem:[%s1242 + $0xe0] sm:$0xff]
        %v1263 = vld [vmem:[%s1242 + $0xf0] sm:$0xff]
        %v1264 = vld [vmem:[%s1242 + $0xf8] sm:$0xff]
        %v1265 = vld [vmem:[%s1242 + $0x108] sm:$0xff]
        %v1266 = vld [vmem:[%s1242 + $0x110] sm:$0xff]
        %v1267 = vld [vmem:[%s1242 + $0x120] sm:$0xff]
        %v1268 = vld [vmem:[%s1242 + $0x128] sm:$0xff]
        %v1269 = vld [vmem:[%s1242 + $0x138] sm:$0xff]
        %v1270 = vld [vmem:[%s1242 + $0x140] sm:$0xff]
        %v1271 = vld [vmem:[%s1242 + $0x150] sm:$0xff]
        %v1272 = vld [vmem:[%s1242 + $0x158] sm:$0xff]
        %v1273 = vld [vmem:[%s1242 + $0x168] sm:$0xff]
        %v1274 = vld [vmem:[%s1242 + $0x170] sm:$0xff]
        %v1275 = vld [vmem:[%s1 + $0x4] sm:$0x1]
        %1277 = vset.pattern.permute.xlu0 0
        %1278 = vperm.xlu0 %1277, %v1243
        %v1279 = vpop.permute.xlu0 %1278
        %1282 = vset.pattern.permute.xlu0 0
        %1283 = vperm.xlu0 %1282, %v1244
        %v1284 = vpop.permute.xlu0 %1283
        %1287 = vset.pattern.permute.xlu0 0
        %1288 = vperm.xlu0 %1287, %v1245
        %v1289 = vpop.permute.xlu0 %1288
        %1292 = vset.pattern.permute.xlu0 0
        %1293 = vperm.xlu0 %1292, %v1246
        %v1294 = vpop.permute.xlu0 %1293
        %1297 = vset.pattern.permute.xlu0 0
        %1298 = vperm.xlu0 %1297, %v1247
        %v1299 = vpop.permute.xlu0 %1298
        %1302 = vset.pattern.permute.xlu0 0
        %1303 = vperm.xlu0 %1302, %v1248
        %v1304 = vpop.permute.xlu0 %1303
        %1307 = vset.pattern.permute.xlu0 0
        %1308 = vperm.xlu0 %1307, %v1249
        %v1309 = vpop.permute.xlu0 %1308
        %1312 = vset.pattern.permute.xlu0 0
        %1313 = vperm.xlu0 %1312, %v1250
        %v1314 = vpop.permute.xlu0 %1313
        %1317 = vset.pattern.permute.xlu0 0
        %1318 = vperm.xlu0 %1317, %v1251
        %v1319 = vpop.permute.xlu0 %1318
        %1322 = vset.pattern.permute.xlu0 0
        %1323 = vperm.xlu0 %1322, %v1252
        %v1324 = vpop.permute.xlu0 %1323
        %1327 = vset.pattern.permute.xlu0 0
        %1328 = vperm.xlu0 %1327, %v1253
        %v1329 = vpop.permute.xlu0 %1328
        %1332 = vset.pattern.permute.xlu0 0
        %1333 = vperm.xlu0 %1332, %v1254
        %v1334 = vpop.permute.xlu0 %1333
        %1337 = vset.pattern.permute.xlu0 0
        %1338 = vperm.xlu0 %1337, %v1255
        %v1339 = vpop.permute.xlu0 %1338
        %1342 = vset.pattern.permute.xlu0 0
        %1343 = vperm.xlu0 %1342, %v1256
        %v1344 = vpop.permute.xlu0 %1343
        %1347 = vset.pattern.permute.xlu0 0
        %1348 = vperm.xlu0 %1347, %v1257
        %v1349 = vpop.permute.xlu0 %1348
        %1352 = vset.pattern.permute.xlu0 0
        %1353 = vperm.xlu0 %1352, %v1258
        %v1354 = vpop.permute.xlu0 %1353
        %1357 = vset.pattern.permute.xlu0 0
        %1358 = vperm.xlu0 %1357, %v1259
        %v1359 = vpop.permute.xlu0 %1358
        %1362 = vset.pattern.permute.xlu0 0
        %1363 = vperm.xlu0 %1362, %v1260
        %v1364 = vpop.permute.xlu0 %1363
        %1367 = vset.pattern.permute.xlu0 0
        %1368 = vperm.xlu0 %1367, %v1261
        %v1369 = vpop.permute.xlu0 %1368
        %1372 = vset.pattern.permute.xlu0 0
        %1373 = vperm.xlu0 %1372, %v1262
        %v1374 = vpop.permute.xlu0 %1373
        %1377 = vset.pattern.permute.xlu0 0
        %1378 = vperm.xlu0 %1377, %v1263
        %v1379 = vpop.permute.xlu0 %1378
        %1382 = vset.pattern.permute.xlu0 0
        %1383 = vperm.xlu0 %1382, %v1264
        %v1384 = vpop.permute.xlu0 %1383
        %1387 = vset.pattern.permute.xlu0 0
        %1388 = vperm.xlu0 %1387, %v1265
        %v1389 = vpop.permute.xlu0 %1388
        %1392 = vset.pattern.permute.xlu0 0
        %1393 = vperm.xlu0 %1392, %v1266
        %v1394 = vpop.permute.xlu0 %1393
        %1397 = vset.pattern.permute.xlu0 0
        %1398 = vperm.xlu0 %1397, %v1267
        %v1399 = vpop.permute.xlu0 %1398
        %1402 = vset.pattern.permute.xlu0 0
        %1403 = vperm.xlu0 %1402, %v1268
        %v1404 = vpop.permute.xlu0 %1403
        %1407 = vset.pattern.permute.xlu0 0
        %1408 = vperm.xlu0 %1407, %v1269
        %v1409 = vpop.permute.xlu0 %1408
        %1412 = vset.pattern.permute.xlu0 0
        %1413 = vperm.xlu0 %1412, %v1270
        %v1414 = vpop.permute.xlu0 %1413
        %1417 = vset.pattern.permute.xlu0 0
        %1418 = vperm.xlu0 %1417, %v1271
        %v1419 = vpop.permute.xlu0 %1418
        %1422 = vset.pattern.permute.xlu0 0
        %1423 = vperm.xlu0 %1422, %v1272
        %v1424 = vpop.permute.xlu0 %1423
        %1427 = vset.pattern.permute.xlu0 0
        %1428 = vperm.xlu0 %1427, %v1273
        %v1429 = vpop.permute.xlu0 %1428
        %1432 = vset.pattern.permute.xlu0 0
        %1433 = vperm.xlu0 %1432, %v1274
        %v1434 = vpop.permute.xlu0 %1433
        %v1436 = vlaneseq
        %v1437 = vshrl.u32 %v1436, 7
        %v1438 = vsub.s32 0, %v1437
        %v1439 = vrot.slane %v1275, %v1438
        %v1440 = vmul.f32 %v1279, %v1439
        %v1441 = vmul.f32 %v1284, %v1439
        %v1442 = vmul.f32 %v1289, %v1439
        %v1443 = vmul.f32 %v1294, %v1439
        %v1444 = vmul.f32 %v1299, %v1439
        %v1445 = vmul.f32 %v1304, %v1439
        %v1446 = vmul.f32 %v1309, %v1439
        %v1447 = vmul.f32 %v1314, %v1439
        %v1448 = vmul.f32 %v1319, %v1439
        %v1449 = vmul.f32 %v1324, %v1439
        %v1450 = vmul.f32 %v1329, %v1439
        %v1451 = vmul.f32 %v1334, %v1439
        %v1452 = vmul.f32 %v1339, %v1439
        %v1453 = vmul.f32 %v1344, %v1439
        %v1454 = vmul.f32 %v1349, %v1439
        %v1455 = vmul.f32 %v1354, %v1439
        %v1456 = vmul.f32 %v1359, %v1439
        %v1457 = vmul.f32 %v1364, %v1439
        %v1458 = vmul.f32 %v1369, %v1439
        %v1459 = vmul.f32 %v1374, %v1439
        %v1460 = vmul.f32 %v1379, %v1439
        %v1461 = vmul.f32 %v1384, %v1439
        %v1462 = vmul.f32 %v1389, %v1439
        %v1463 = vmul.f32 %v1394, %v1439
        %v1464 = vmul.f32 %v1399, %v1439
        %v1465 = vmul.f32 %v1404, %v1439
        %v1466 = vmul.f32 %v1409, %v1439
        %v1467 = vmul.f32 %v1414, %v1439
        %v1468 = vmul.f32 %v1419, %v1439
        %v1469 = vmul.f32 %v1424, %v1439
        %v1470 = vmul.f32 %v1429, %v1439
        %v1471 = vmul.f32 %v1434, %v1439
        %v1472 = vadd.f32 %v1210, %v1440
        %v1473 = vadd.f32 %v1211, %v1441
        %v1474 = vadd.f32 %v1212, %v1442
        %v1475 = vadd.f32 %v1213, %v1443
        %v1476 = vadd.f32 %v1214, %v1444
        %v1477 = vadd.f32 %v1215, %v1445
        %v1478 = vadd.f32 %v1216, %v1446
        %v1479 = vadd.f32 %v1217, %v1447
        %v1480 = vadd.f32 %v1218, %v1448
        %v1481 = vadd.f32 %v1219, %v1449
        %v1482 = vadd.f32 %v1220, %v1450
        %v1483 = vadd.f32 %v1221, %v1451
        %v1484 = vadd.f32 %v1222, %v1452
        %v1485 = vadd.f32 %v1223, %v1453
        %v1486 = vadd.f32 %v1224, %v1454
        %v1487 = vadd.f32 %v1225, %v1455
        %v1488 = vadd.f32 %v1226, %v1456
        %v1489 = vadd.f32 %v1227, %v1457
        %v1490 = vadd.f32 %v1228, %v1458
        %v1491 = vadd.f32 %v1229, %v1459
        %v1492 = vadd.f32 %v1230, %v1460
        %v1493 = vadd.f32 %v1231, %v1461
        %v1494 = vadd.f32 %v1232, %v1462
        %v1495 = vadd.f32 %v1233, %v1463
        %v1496 = vadd.f32 %v1234, %v1464
        %v1497 = vadd.f32 %v1235, %v1465
        %v1498 = vadd.f32 %v1236, %v1466
        %v1499 = vadd.f32 %v1237, %v1467
        %v1500 = vadd.f32 %v1238, %v1468
        %v1501 = vadd.f32 %v1239, %v1469
        %v1502 = vadd.f32 %v1240, %v1470
        %v1503 = vadd.f32 %v1241, %v1471
        %v1504 = vld [vmem:[%s980 + $0x1] sm:$0xff]
        %v1505 = vld [vmem:[%s980 + $0x9] sm:$0xff]
        %v1506 = vld [vmem:[%s980 + $0x19] sm:$0xff]
        %v1507 = vld [vmem:[%s980 + $0x21] sm:$0xff]
        %v1508 = vld [vmem:[%s980 + $0x31] sm:$0xff]
        %v1509 = vld [vmem:[%s980 + $0x39] sm:$0xff]
        %v1510 = vld [vmem:[%s980 + $0x49] sm:$0xff]
        %v1511 = vld [vmem:[%s980 + $0x51] sm:$0xff]
        %v1512 = vld [vmem:[%s980 + $0x61] sm:$0xff]
        %v1513 = vld [vmem:[%s980 + $0x69] sm:$0xff]
        %v1514 = vld [vmem:[%s980 + $0x79] sm:$0xff]
        %v1515 = vld [vmem:[%s980 + $0x81] sm:$0xff]
        %v1516 = vld [vmem:[%s980 + $0x91] sm:$0xff]
        %v1517 = vld [vmem:[%s980 + $0x99] sm:$0xff]
        %v1518 = vld [vmem:[%s980 + $0xa9] sm:$0xff]
        %v1519 = vld [vmem:[%s980 + $0xb1] sm:$0xff]
        %v1520 = vld [vmem:[%s980 + $0xc1] sm:$0xff]
        %v1521 = vld [vmem:[%s980 + $0xc9] sm:$0xff]
        %v1522 = vld [vmem:[%s980 + $0xd9] sm:$0xff]
        %v1523 = vld [vmem:[%s980 + $0xe1] sm:$0xff]
        %v1524 = vld [vmem:[%s980 + $0xf1] sm:$0xff]
        %v1525 = vld [vmem:[%s980 + $0xf9] sm:$0xff]
        %v1526 = vld [vmem:[%s980 + $0x109] sm:$0xff]
        %v1527 = vld [vmem:[%s980 + $0x111] sm:$0xff]
        %v1528 = vld [vmem:[%s980 + $0x121] sm:$0xff]
        %v1529 = vld [vmem:[%s980 + $0x129] sm:$0xff]
        %v1530 = vld [vmem:[%s980 + $0x139] sm:$0xff]
        %v1531 = vld [vmem:[%s980 + $0x141] sm:$0xff]
        %v1532 = vld [vmem:[%s980 + $0x151] sm:$0xff]
        %v1533 = vld [vmem:[%s980 + $0x159] sm:$0xff]
        %v1534 = vld [vmem:[%s980 + $0x169] sm:$0xff]
        %v1535 = vld [vmem:[%s980 + $0x171] sm:$0xff]
        %v1536 = vld [vmem:[%s1 + $0x5] sm:$0x1]
        %1538 = vset.pattern.permute.xlu0 0
        %1539 = vperm.xlu0 %1538, %v1504
        %v1540 = vpop.permute.xlu0 %1539
        %1543 = vset.pattern.permute.xlu0 0
        %1544 = vperm.xlu0 %1543, %v1505
        %v1545 = vpop.permute.xlu0 %1544
        %1548 = vset.pattern.permute.xlu0 0
        %1549 = vperm.xlu0 %1548, %v1506
        %v1550 = vpop.permute.xlu0 %1549
        %1553 = vset.pattern.permute.xlu0 0
        %1554 = vperm.xlu0 %1553, %v1507
        %v1555 = vpop.permute.xlu0 %1554
        %1558 = vset.pattern.permute.xlu0 0
        %1559 = vperm.xlu0 %1558, %v1508
        %v1560 = vpop.permute.xlu0 %1559
        %1563 = vset.pattern.permute.xlu0 0
        %1564 = vperm.xlu0 %1563, %v1509
        %v1565 = vpop.permute.xlu0 %1564
        %1568 = vset.pattern.permute.xlu0 0
        %1569 = vperm.xlu0 %1568, %v1510
        %v1570 = vpop.permute.xlu0 %1569
        %1573 = vset.pattern.permute.xlu0 0
        %1574 = vperm.xlu0 %1573, %v1511
        %v1575 = vpop.permute.xlu0 %1574
        %1578 = vset.pattern.permute.xlu0 0
        %1579 = vperm.xlu0 %1578, %v1512
        %v1580 = vpop.permute.xlu0 %1579
        %1583 = vset.pattern.permute.xlu0 0
        %1584 = vperm.xlu0 %1583, %v1513
        %v1585 = vpop.permute.xlu0 %1584
        %1588 = vset.pattern.permute.xlu0 0
        %1589 = vperm.xlu0 %1588, %v1514
        %v1590 = vpop.permute.xlu0 %1589
        %1593 = vset.pattern.permute.xlu0 0
        %1594 = vperm.xlu0 %1593, %v1515
        %v1595 = vpop.permute.xlu0 %1594
        %1598 = vset.pattern.permute.xlu0 0
        %1599 = vperm.xlu0 %1598, %v1516
        %v1600 = vpop.permute.xlu0 %1599
        %1603 = vset.pattern.permute.xlu0 0
        %1604 = vperm.xlu0 %1603, %v1517
        %v1605 = vpop.permute.xlu0 %1604
        %1608 = vset.pattern.permute.xlu0 0
        %1609 = vperm.xlu0 %1608, %v1518
        %v1610 = vpop.permute.xlu0 %1609
        %1613 = vset.pattern.permute.xlu0 0
        %1614 = vperm.xlu0 %1613, %v1519
        %v1615 = vpop.permute.xlu0 %1614
        %1618 = vset.pattern.permute.xlu0 0
        %1619 = vperm.xlu0 %1618, %v1520
        %v1620 = vpop.permute.xlu0 %1619
        %1623 = vset.pattern.permute.xlu0 0
        %1624 = vperm.xlu0 %1623, %v1521
        %v1625 = vpop.permute.xlu0 %1624
        %1628 = vset.pattern.permute.xlu0 0
        %1629 = vperm.xlu0 %1628, %v1522
        %v1630 = vpop.permute.xlu0 %1629
        %1633 = vset.pattern.permute.xlu0 0
        %1634 = vperm.xlu0 %1633, %v1523
        %v1635 = vpop.permute.xlu0 %1634
        %1638 = vset.pattern.permute.xlu0 0
        %1639 = vperm.xlu0 %1638, %v1524
        %v1640 = vpop.permute.xlu0 %1639
        %1643 = vset.pattern.permute.xlu0 0
        %1644 = vperm.xlu0 %1643, %v1525
        %v1645 = vpop.permute.xlu0 %1644
        %1648 = vset.pattern.permute.xlu0 0
        %1649 = vperm.xlu0 %1648, %v1526
        %v1650 = vpop.permute.xlu0 %1649
        %1653 = vset.pattern.permute.xlu0 0
        %1654 = vperm.xlu0 %1653, %v1527
        %v1655 = vpop.permute.xlu0 %1654
        %1658 = vset.pattern.permute.xlu0 0
        %1659 = vperm.xlu0 %1658, %v1528
        %v1660 = vpop.permute.xlu0 %1659
        %1663 = vset.pattern.permute.xlu0 0
        %1664 = vperm.xlu0 %1663, %v1529
        %v1665 = vpop.permute.xlu0 %1664
        %1668 = vset.pattern.permute.xlu0 0
        %1669 = vperm.xlu0 %1668, %v1530
        %v1670 = vpop.permute.xlu0 %1669
        %1673 = vset.pattern.permute.xlu0 0
        %1674 = vperm.xlu0 %1673, %v1531
        %v1675 = vpop.permute.xlu0 %1674
        %1678 = vset.pattern.permute.xlu0 0
        %1679 = vperm.xlu0 %1678, %v1532
        %v1680 = vpop.permute.xlu0 %1679
        %1683 = vset.pattern.permute.xlu0 0
        %1684 = vperm.xlu0 %1683, %v1533
        %v1685 = vpop.permute.xlu0 %1684
        %1688 = vset.pattern.permute.xlu0 0
        %1689 = vperm.xlu0 %1688, %v1534
        %v1690 = vpop.permute.xlu0 %1689
        %1693 = vset.pattern.permute.xlu0 0
        %1694 = vperm.xlu0 %1693, %v1535
        %v1695 = vpop.permute.xlu0 %1694
        %v1697 = vlaneseq
        %v1698 = vshrl.u32 %v1697, 7
        %v1699 = vsub.s32 0, %v1698
        %v1700 = vrot.slane %v1536, %v1699
        %v1701 = vmul.f32 %v1540, %v1700
        %v1702 = vmul.f32 %v1545, %v1700
        %v1703 = vmul.f32 %v1550, %v1700
        %v1704 = vmul.f32 %v1555, %v1700
        %v1705 = vmul.f32 %v1560, %v1700
        %v1706 = vmul.f32 %v1565, %v1700
        %v1707 = vmul.f32 %v1570, %v1700
        %v1708 = vmul.f32 %v1575, %v1700
        %v1709 = vmul.f32 %v1580, %v1700
        %v1710 = vmul.f32 %v1585, %v1700
        %v1711 = vmul.f32 %v1590, %v1700
        %v1712 = vmul.f32 %v1595, %v1700
        %v1713 = vmul.f32 %v1600, %v1700
        %v1714 = vmul.f32 %v1605, %v1700
        %v1715 = vmul.f32 %v1610, %v1700
        %v1716 = vmul.f32 %v1615, %v1700
        %v1717 = vmul.f32 %v1620, %v1700
        %v1718 = vmul.f32 %v1625, %v1700
        %v1719 = vmul.f32 %v1630, %v1700
        %v1720 = vmul.f32 %v1635, %v1700
        %v1721 = vmul.f32 %v1640, %v1700
        %v1722 = vmul.f32 %v1645, %v1700
        %v1723 = vmul.f32 %v1650, %v1700
        %v1724 = vmul.f32 %v1655, %v1700
        %v1725 = vmul.f32 %v1660, %v1700
        %v1726 = vmul.f32 %v1665, %v1700
        %v1727 = vmul.f32 %v1670, %v1700
        %v1728 = vmul.f32 %v1675, %v1700
        %v1729 = vmul.f32 %v1680, %v1700
        %v1730 = vmul.f32 %v1685, %v1700
        %v1731 = vmul.f32 %v1690, %v1700
        %v1732 = vmul.f32 %v1695, %v1700
        %v1733 = vadd.f32 %v1472, %v1701
        %v1734 = vadd.f32 %v1473, %v1702
        %v1735 = vadd.f32 %v1474, %v1703
        %v1736 = vadd.f32 %v1475, %v1704
        %v1737 = vadd.f32 %v1476, %v1705
        %v1738 = vadd.f32 %v1477, %v1706
        %v1739 = vadd.f32 %v1478, %v1707
        %v1740 = vadd.f32 %v1479, %v1708
        %v1741 = vadd.f32 %v1480, %v1709
        %v1742 = vadd.f32 %v1481, %v1710
        %v1743 = vadd.f32 %v1482, %v1711
        %v1744 = vadd.f32 %v1483, %v1712
        %v1745 = vadd.f32 %v1484, %v1713
        %v1746 = vadd.f32 %v1485, %v1714
        %v1747 = vadd.f32 %v1486, %v1715
        %v1748 = vadd.f32 %v1487, %v1716
        %v1749 = vadd.f32 %v1488, %v1717
        %v1750 = vadd.f32 %v1489, %v1718
        %v1751 = vadd.f32 %v1490, %v1719
        %v1752 = vadd.f32 %v1491, %v1720
        %v1753 = vadd.f32 %v1492, %v1721
        %v1754 = vadd.f32 %v1493, %v1722
        %v1755 = vadd.f32 %v1494, %v1723
        %v1756 = vadd.f32 %v1495, %v1724
        %v1757 = vadd.f32 %v1496, %v1725
        %v1758 = vadd.f32 %v1497, %v1726
        %v1759 = vadd.f32 %v1498, %v1727
        %v1760 = vadd.f32 %v1499, %v1728
        %v1761 = vadd.f32 %v1500, %v1729
        %v1762 = vadd.f32 %v1501, %v1730
        %v1763 = vadd.f32 %v1502, %v1731
        %v1764 = vadd.f32 %v1503, %v1732
        %s1765 = scalar_lea.vmem %s195, 24
        %v1766 = vld [vmem:[%s1765] sm:$0xff]
        %v1767 = vld [vmem:[%s1765 + $0x8] sm:$0xff]
        %v1768 = vld [vmem:[%s1765 + $0x18] sm:$0xff]
        %v1769 = vld [vmem:[%s1765 + $0x20] sm:$0xff]
        %v1770 = vld [vmem:[%s1765 + $0x30] sm:$0xff]
        %v1771 = vld [vmem:[%s1765 + $0x38] sm:$0xff]
        %v1772 = vld [vmem:[%s1765 + $0x48] sm:$0xff]
        %v1773 = vld [vmem:[%s1765 + $0x50] sm:$0xff]
        %v1774 = vld [vmem:[%s1765 + $0x60] sm:$0xff]
        %v1775 = vld [vmem:[%s1765 + $0x68] sm:$0xff]
        %v1776 = vld [vmem:[%s1765 + $0x78] sm:$0xff]
        %v1777 = vld [vmem:[%s1765 + $0x80] sm:$0xff]
        %v1778 = vld [vmem:[%s1765 + $0x90] sm:$0xff]
        %v1779 = vld [vmem:[%s1765 + $0x98] sm:$0xff]
        %v1780 = vld [vmem:[%s1765 + $0xa8] sm:$0xff]
        %v1781 = vld [vmem:[%s1765 + $0xb0] sm:$0xff]
        %v1782 = vld [vmem:[%s1765 + $0xc0] sm:$0xff]
        %v1783 = vld [vmem:[%s1765 + $0xc8] sm:$0xff]
        %v1784 = vld [vmem:[%s1765 + $0xd8] sm:$0xff]
        %v1785 = vld [vmem:[%s1765 + $0xe0] sm:$0xff]
        %v1786 = vld [vmem:[%s1765 + $0xf0] sm:$0xff]
        %v1787 = vld [vmem:[%s1765 + $0xf8] sm:$0xff]
        %v1788 = vld [vmem:[%s1765 + $0x108] sm:$0xff]
        %v1789 = vld [vmem:[%s1765 + $0x110] sm:$0xff]
        %v1790 = vld [vmem:[%s1765 + $0x120] sm:$0xff]
        %v1791 = vld [vmem:[%s1765 + $0x128] sm:$0xff]
        %v1792 = vld [vmem:[%s1765 + $0x138] sm:$0xff]
        %v1793 = vld [vmem:[%s1765 + $0x140] sm:$0xff]
        %v1794 = vld [vmem:[%s1765 + $0x150] sm:$0xff]
        %v1795 = vld [vmem:[%s1765 + $0x158] sm:$0xff]
        %v1796 = vld [vmem:[%s1765 + $0x168] sm:$0xff]
        %v1797 = vld [vmem:[%s1765 + $0x170] sm:$0xff]
        %v1798 = vld [vmem:[%s1 + $0x6] sm:$0x1]
        %1800 = vset.pattern.permute.xlu0 0
        %1801 = vperm.xlu0 %1800, %v1766
        %v1802 = vpop.permute.xlu0 %1801
        %1805 = vset.pattern.permute.xlu0 0
        %1806 = vperm.xlu0 %1805, %v1767
        %v1807 = vpop.permute.xlu0 %1806
        %1810 = vset.pattern.permute.xlu0 0
        %1811 = vperm.xlu0 %1810, %v1768
        %v1812 = vpop.permute.xlu0 %1811
        %1815 = vset.pattern.permute.xlu0 0
        %1816 = vperm.xlu0 %1815, %v1769
        %v1817 = vpop.permute.xlu0 %1816
        %1820 = vset.pattern.permute.xlu0 0
        %1821 = vperm.xlu0 %1820, %v1770
        %v1822 = vpop.permute.xlu0 %1821
        %1825 = vset.pattern.permute.xlu0 0
        %1826 = vperm.xlu0 %1825, %v1771
        %v1827 = vpop.permute.xlu0 %1826
        %1830 = vset.pattern.permute.xlu0 0
        %1831 = vperm.xlu0 %1830, %v1772
        %v1832 = vpop.permute.xlu0 %1831
        %1835 = vset.pattern.permute.xlu0 0
        %1836 = vperm.xlu0 %1835, %v1773
        %v1837 = vpop.permute.xlu0 %1836
        %1840 = vset.pattern.permute.xlu0 0
        %1841 = vperm.xlu0 %1840, %v1774
        %v1842 = vpop.permute.xlu0 %1841
        %1845 = vset.pattern.permute.xlu0 0
        %1846 = vperm.xlu0 %1845, %v1775
        %v1847 = vpop.permute.xlu0 %1846
        %1850 = vset.pattern.permute.xlu0 0
        %1851 = vperm.xlu0 %1850, %v1776
        %v1852 = vpop.permute.xlu0 %1851
        %1855 = vset.pattern.permute.xlu0 0
        %1856 = vperm.xlu0 %1855, %v1777
        %v1857 = vpop.permute.xlu0 %1856
        %1860 = vset.pattern.permute.xlu0 0
        %1861 = vperm.xlu0 %1860, %v1778
        %v1862 = vpop.permute.xlu0 %1861
        %1865 = vset.pattern.permute.xlu0 0
        %1866 = vperm.xlu0 %1865, %v1779
        %v1867 = vpop.permute.xlu0 %1866
        %1870 = vset.pattern.permute.xlu0 0
        %1871 = vperm.xlu0 %1870, %v1780
        %v1872 = vpop.permute.xlu0 %1871
        %1875 = vset.pattern.permute.xlu0 0
        %1876 = vperm.xlu0 %1875, %v1781
        %v1877 = vpop.permute.xlu0 %1876
        %1880 = vset.pattern.permute.xlu0 0
        %1881 = vperm.xlu0 %1880, %v1782
        %v1882 = vpop.permute.xlu0 %1881
        %1885 = vset.pattern.permute.xlu0 0
        %1886 = vperm.xlu0 %1885, %v1783
        %v1887 = vpop.permute.xlu0 %1886
        %1890 = vset.pattern.permute.xlu0 0
        %1891 = vperm.xlu0 %1890, %v1784
        %v1892 = vpop.permute.xlu0 %1891
        %1895 = vset.pattern.permute.xlu0 0
        %1896 = vperm.xlu0 %1895, %v1785
        %v1897 = vpop.permute.xlu0 %1896
        %1900 = vset.pattern.permute.xlu0 0
        %1901 = vperm.xlu0 %1900, %v1786
        %v1902 = vpop.permute.xlu0 %1901
        %1905 = vset.pattern.permute.xlu0 0
        %1906 = vperm.xlu0 %1905, %v1787
        %v1907 = vpop.permute.xlu0 %1906
        %1910 = vset.pattern.permute.xlu0 0
        %1911 = vperm.xlu0 %1910, %v1788
        %v1912 = vpop.permute.xlu0 %1911
        %1915 = vset.pattern.permute.xlu0 0
        %1916 = vperm.xlu0 %1915, %v1789
        %v1917 = vpop.permute.xlu0 %1916
        %1920 = vset.pattern.permute.xlu0 0
        %1921 = vperm.xlu0 %1920, %v1790
        %v1922 = vpop.permute.xlu0 %1921
        %1925 = vset.pattern.permute.xlu0 0
        %1926 = vperm.xlu0 %1925, %v1791
        %v1927 = vpop.permute.xlu0 %1926
        %1930 = vset.pattern.permute.xlu0 0
        %1931 = vperm.xlu0 %1930, %v1792
        %v1932 = vpop.permute.xlu0 %1931
        %1935 = vset.pattern.permute.xlu0 0
        %1936 = vperm.xlu0 %1935, %v1793
        %v1937 = vpop.permute.xlu0 %1936
        %1940 = vset.pattern.permute.xlu0 0
        %1941 = vperm.xlu0 %1940, %v1794
        %v1942 = vpop.permute.xlu0 %1941
        %1945 = vset.pattern.permute.xlu0 0
        %1946 = vperm.xlu0 %1945, %v1795
        %v1947 = vpop.permute.xlu0 %1946
        %1950 = vset.pattern.permute.xlu0 0
        %1951 = vperm.xlu0 %1950, %v1796
        %v1952 = vpop.permute.xlu0 %1951
        %1955 = vset.pattern.permute.xlu0 0
        %1956 = vperm.xlu0 %1955, %v1797
        %v1957 = vpop.permute.xlu0 %1956
        %v1959 = vlaneseq
        %v1960 = vshrl.u32 %v1959, 7
        %v1961 = vsub.s32 0, %v1960
        %v1962 = vrot.slane %v1798, %v1961
        %v1963 = vmul.f32 %v1802, %v1962
        %v1964 = vmul.f32 %v1807, %v1962
        %v1965 = vmul.f32 %v1812, %v1962
        %v1966 = vmul.f32 %v1817, %v1962
        %v1967 = vmul.f32 %v1822, %v1962
        %v1968 = vmul.f32 %v1827, %v1962
        %v1969 = vmul.f32 %v1832, %v1962
        %v1970 = vmul.f32 %v1837, %v1962
        %v1971 = vmul.f32 %v1842, %v1962
        %v1972 = vmul.f32 %v1847, %v1962
        %v1973 = vmul.f32 %v1852, %v1962
        %v1974 = vmul.f32 %v1857, %v1962
        %v1975 = vmul.f32 %v1862, %v1962
        %v1976 = vmul.f32 %v1867, %v1962
        %v1977 = vmul.f32 %v1872, %v1962
        %v1978 = vmul.f32 %v1877, %v1962
        %v1979 = vmul.f32 %v1882, %v1962
        %v1980 = vmul.f32 %v1887, %v1962
        %v1981 = vmul.f32 %v1892, %v1962
        %v1982 = vmul.f32 %v1897, %v1962
        %v1983 = vmul.f32 %v1902, %v1962
        %v1984 = vmul.f32 %v1907, %v1962
        %v1985 = vmul.f32 %v1912, %v1962
        %v1986 = vmul.f32 %v1917, %v1962
        %v1987 = vmul.f32 %v1922, %v1962
        %v1988 = vmul.f32 %v1927, %v1962
        %v1989 = vmul.f32 %v1932, %v1962
        %v1990 = vmul.f32 %v1937, %v1962
        %v1991 = vmul.f32 %v1942, %v1962
        %v1992 = vmul.f32 %v1947, %v1962
        %v1993 = vmul.f32 %v1952, %v1962
        %v1994 = vmul.f32 %v1957, %v1962
        %v1995 = vadd.f32 %v1733, %v1963
        %v1996 = vadd.f32 %v1734, %v1964
        %v1997 = vadd.f32 %v1735, %v1965
        %v1998 = vadd.f32 %v1736, %v1966
        %v1999 = vadd.f32 %v1737, %v1967
        %v2000 = vadd.f32 %v1738, %v1968
        %v2001 = vadd.f32 %v1739, %v1969
        %v2002 = vadd.f32 %v1740, %v1970
        %v2003 = vadd.f32 %v1741, %v1971
        %v2004 = vadd.f32 %v1742, %v1972
        %v2005 = vadd.f32 %v1743, %v1973
        %v2006 = vadd.f32 %v1744, %v1974
        %v2007 = vadd.f32 %v1745, %v1975
        %v2008 = vadd.f32 %v1746, %v1976
        %v2009 = vadd.f32 %v1747, %v1977
        %v2010 = vadd.f32 %v1748, %v1978
        %v2011 = vadd.f32 %v1749, %v1979
        %v2012 = vadd.f32 %v1750, %v1980
        %v2013 = vadd.f32 %v1751, %v1981
        %v2014 = vadd.f32 %v1752, %v1982
        %v2015 = vadd.f32 %v1753, %v1983
        %v2016 = vadd.f32 %v1754, %v1984
        %v2017 = vadd.f32 %v1755, %v1985
        %v2018 = vadd.f32 %v1756, %v1986
        %v2019 = vadd.f32 %v1757, %v1987
        %v2020 = vadd.f32 %v1758, %v1988
        %v2021 = vadd.f32 %v1759, %v1989
        %v2022 = vadd.f32 %v1760, %v1990
        %v2023 = vadd.f32 %v1761, %v1991
        %v2024 = vadd.f32 %v1762, %v1992
        %v2025 = vadd.f32 %v1763, %v1993
        %v2026 = vadd.f32 %v1764, %v1994
        %s2027 = scalar_lea.vmem %s195, 432
        %v2028 = vld [vmem:[%s2027] sm:$0xff]
        %v2029 = vld [vmem:[%s2027 + $0x8] sm:$0xff]
        %v2030 = vld [vmem:[%s2027 + $0x18] sm:$0xff]
        %v2031 = vld [vmem:[%s2027 + $0x20] sm:$0xff]
        %v2032 = vld [vmem:[%s2027 + $0x30] sm:$0xff]
        %v2033 = vld [vmem:[%s2027 + $0x38] sm:$0xff]
        %v2034 = vld [vmem:[%s2027 + $0x48] sm:$0xff]
        %v2035 = vld [vmem:[%s2027 + $0x50] sm:$0xff]
        %v2036 = vld [vmem:[%s2027 + $0x60] sm:$0xff]
        %v2037 = vld [vmem:[%s2027 + $0x68] sm:$0xff]
        %v2038 = vld [vmem:[%s2027 + $0x78] sm:$0xff]
        %v2039 = vld [vmem:[%s2027 + $0x80] sm:$0xff]
        %v2040 = vld [vmem:[%s2027 + $0x90] sm:$0xff]
        %v2041 = vld [vmem:[%s2027 + $0x98] sm:$0xff]
        %v2042 = vld [vmem:[%s2027 + $0xa8] sm:$0xff]
        %v2043 = vld [vmem:[%s2027 + $0xb0] sm:$0xff]
        %v2044 = vld [vmem:[%s2027 + $0xc0] sm:$0xff]
        %v2045 = vld [vmem:[%s2027 + $0xc8] sm:$0xff]
        %v2046 = vld [vmem:[%s2027 + $0xd8] sm:$0xff]
        %v2047 = vld [vmem:[%s2027 + $0xe0] sm:$0xff]
        %v2048 = vld [vmem:[%s2027 + $0xf0] sm:$0xff]
        %v2049 = vld [vmem:[%s2027 + $0xf8] sm:$0xff]
        %v2050 = vld [vmem:[%s2027 + $0x108] sm:$0xff]
        %v2051 = vld [vmem:[%s2027 + $0x110] sm:$0xff]
        %v2052 = vld [vmem:[%s2027 + $0x120] sm:$0xff]
        %v2053 = vld [vmem:[%s2027 + $0x128] sm:$0xff]
        %v2054 = vld [vmem:[%s2027 + $0x138] sm:$0xff]
        %v2055 = vld [vmem:[%s2027 + $0x140] sm:$0xff]
        %v2056 = vld [vmem:[%s2027 + $0x150] sm:$0xff]
        %v2057 = vld [vmem:[%s2027 + $0x158] sm:$0xff]
        %v2058 = vld [vmem:[%s2027 + $0x168] sm:$0xff]
        %v2059 = vld [vmem:[%s2027 + $0x170] sm:$0xff]
        %v2060 = vld [vmem:[%s1 + $0x7] sm:$0x1]
        %2062 = vset.pattern.permute.xlu0 0
        %2063 = vperm.xlu0 %2062, %v2028
        %v2064 = vpop.permute.xlu0 %2063
        %2067 = vset.pattern.permute.xlu0 0
        %2068 = vperm.xlu0 %2067, %v2029
        %v2069 = vpop.permute.xlu0 %2068
        %2072 = vset.pattern.permute.xlu0 0
        %2073 = vperm.xlu0 %2072, %v2030
        %v2074 = vpop.permute.xlu0 %2073
        %2077 = vset.pattern.permute.xlu0 0
        %2078 = vperm.xlu0 %2077, %v2031
        %v2079 = vpop.permute.xlu0 %2078
        %2082 = vset.pattern.permute.xlu0 0
        %2083 = vperm.xlu0 %2082, %v2032
        %v2084 = vpop.permute.xlu0 %2083
        %2087 = vset.pattern.permute.xlu0 0
        %2088 = vperm.xlu0 %2087, %v2033
        %v2089 = vpop.permute.xlu0 %2088
        %2092 = vset.pattern.permute.xlu0 0
        %2093 = vperm.xlu0 %2092, %v2034
        %v2094 = vpop.permute.xlu0 %2093
        %2097 = vset.pattern.permute.xlu0 0
        %2098 = vperm.xlu0 %2097, %v2035
        %v2099 = vpop.permute.xlu0 %2098
        %2102 = vset.pattern.permute.xlu0 0
        %2103 = vperm.xlu0 %2102, %v2036
        %v2104 = vpop.permute.xlu0 %2103
        %2107 = vset.pattern.permute.xlu0 0
        %2108 = vperm.xlu0 %2107, %v2037
        %v2109 = vpop.permute.xlu0 %2108
        %2112 = vset.pattern.permute.xlu0 0
        %2113 = vperm.xlu0 %2112, %v2038
        %v2114 = vpop.permute.xlu0 %2113
        %2117 = vset.pattern.permute.xlu0 0
        %2118 = vperm.xlu0 %2117, %v2039
        %v2119 = vpop.permute.xlu0 %2118
        %2122 = vset.pattern.permute.xlu0 0
        %2123 = vperm.xlu0 %2122, %v2040
        %v2124 = vpop.permute.xlu0 %2123
        %2127 = vset.pattern.permute.xlu0 0
        %2128 = vperm.xlu0 %2127, %v2041
        %v2129 = vpop.permute.xlu0 %2128
        %2132 = vset.pattern.permute.xlu0 0
        %2133 = vperm.xlu0 %2132, %v2042
        %v2134 = vpop.permute.xlu0 %2133
        %2137 = vset.pattern.permute.xlu0 0
        %2138 = vperm.xlu0 %2137, %v2043
        %v2139 = vpop.permute.xlu0 %2138
        %2142 = vset.pattern.permute.xlu0 0
        %2143 = vperm.xlu0 %2142, %v2044
        %v2144 = vpop.permute.xlu0 %2143
        %2147 = vset.pattern.permute.xlu0 0
        %2148 = vperm.xlu0 %2147, %v2045
        %v2149 = vpop.permute.xlu0 %2148
        %2152 = vset.pattern.permute.xlu0 0
        %2153 = vperm.xlu0 %2152, %v2046
        %v2154 = vpop.permute.xlu0 %2153
        %2157 = vset.pattern.permute.xlu0 0
        %2158 = vperm.xlu0 %2157, %v2047
        %v2159 = vpop.permute.xlu0 %2158
        %2162 = vset.pattern.permute.xlu0 0
        %2163 = vperm.xlu0 %2162, %v2048
        %v2164 = vpop.permute.xlu0 %2163
        %2167 = vset.pattern.permute.xlu0 0
        %2168 = vperm.xlu0 %2167, %v2049
        %v2169 = vpop.permute.xlu0 %2168
        %2172 = vset.pattern.permute.xlu0 0
        %2173 = vperm.xlu0 %2172, %v2050
        %v2174 = vpop.permute.xlu0 %2173
        %2177 = vset.pattern.permute.xlu0 0
        %2178 = vperm.xlu0 %2177, %v2051
        %v2179 = vpop.permute.xlu0 %2178
        %2182 = vset.pattern.permute.xlu0 0
        %2183 = vperm.xlu0 %2182, %v2052
        %v2184 = vpop.permute.xlu0 %2183
        %2187 = vset.pattern.permute.xlu0 0
        %2188 = vperm.xlu0 %2187, %v2053
        %v2189 = vpop.permute.xlu0 %2188
        %2192 = vset.pattern.permute.xlu0 0
        %2193 = vperm.xlu0 %2192, %v2054
        %v2194 = vpop.permute.xlu0 %2193
        %2197 = vset.pattern.permute.xlu0 0
        %2198 = vperm.xlu0 %2197, %v2055
        %v2199 = vpop.permute.xlu0 %2198
        %2202 = vset.pattern.permute.xlu0 0
        %2203 = vperm.xlu0 %2202, %v2056
        %v2204 = vpop.permute.xlu0 %2203
        %2207 = vset.pattern.permute.xlu0 0
        %2208 = vperm.xlu0 %2207, %v2057
        %v2209 = vpop.permute.xlu0 %2208
        %2212 = vset.pattern.permute.xlu0 0
        %2213 = vperm.xlu0 %2212, %v2058
        %v2214 = vpop.permute.xlu0 %2213
        %2217 = vset.pattern.permute.xlu0 0
        %2218 = vperm.xlu0 %2217, %v2059
        %v2219 = vpop.permute.xlu0 %2218
        %v2221 = vlaneseq
        %v2222 = vshrl.u32 %v2221, 7
        %v2223 = vsub.s32 0, %v2222
        %v2224 = vrot.slane %v2060, %v2223
        %v2225 = vmul.f32 %v2064, %v2224
        %v2226 = vmul.f32 %v2069, %v2224
        %v2227 = vmul.f32 %v2074, %v2224
        %v2228 = vmul.f32 %v2079, %v2224
        %v2229 = vmul.f32 %v2084, %v2224
        %v2230 = vmul.f32 %v2089, %v2224
        %v2231 = vmul.f32 %v2094, %v2224
        %v2232 = vmul.f32 %v2099, %v2224
        %v2233 = vmul.f32 %v2104, %v2224
        %v2234 = vmul.f32 %v2109, %v2224
        %v2235 = vmul.f32 %v2114, %v2224
        %v2236 = vmul.f32 %v2119, %v2224
        %v2237 = vmul.f32 %v2124, %v2224
        %v2238 = vmul.f32 %v2129, %v2224
        %v2239 = vmul.f32 %v2134, %v2224
        %v2240 = vmul.f32 %v2139, %v2224
        %v2241 = vmul.f32 %v2144, %v2224
        %v2242 = vmul.f32 %v2149, %v2224
        %v2243 = vmul.f32 %v2154, %v2224
        %v2244 = vmul.f32 %v2159, %v2224
        %v2245 = vmul.f32 %v2164, %v2224
        %v2246 = vmul.f32 %v2169, %v2224
        %v2247 = vmul.f32 %v2174, %v2224
        %v2248 = vmul.f32 %v2179, %v2224
        %v2249 = vmul.f32 %v2184, %v2224
        %v2250 = vmul.f32 %v2189, %v2224
        %v2251 = vmul.f32 %v2194, %v2224
        %v2252 = vmul.f32 %v2199, %v2224
        %v2253 = vmul.f32 %v2204, %v2224
        %v2254 = vmul.f32 %v2209, %v2224
        %v2255 = vmul.f32 %v2214, %v2224
        %v2256 = vmul.f32 %v2219, %v2224
        %v2257 = vadd.f32 %v1995, %v2225
        %v2258 = vadd.f32 %v1996, %v2226
        %v2259 = vadd.f32 %v1997, %v2227
        %v2260 = vadd.f32 %v1998, %v2228
        %v2261 = vadd.f32 %v1999, %v2229
        %v2262 = vadd.f32 %v2000, %v2230
        %v2263 = vadd.f32 %v2001, %v2231
        %v2264 = vadd.f32 %v2002, %v2232
        %v2265 = vadd.f32 %v2003, %v2233
        %v2266 = vadd.f32 %v2004, %v2234
        %v2267 = vadd.f32 %v2005, %v2235
        %v2268 = vadd.f32 %v2006, %v2236
        %v2269 = vadd.f32 %v2007, %v2237
        %v2270 = vadd.f32 %v2008, %v2238
        %v2271 = vadd.f32 %v2009, %v2239
        %v2272 = vadd.f32 %v2010, %v2240
        %v2273 = vadd.f32 %v2011, %v2241
        %v2274 = vadd.f32 %v2012, %v2242
        %v2275 = vadd.f32 %v2013, %v2243
        %v2276 = vadd.f32 %v2014, %v2244
        %v2277 = vadd.f32 %v2015, %v2245
        %v2278 = vadd.f32 %v2016, %v2246
        %v2279 = vadd.f32 %v2017, %v2247
        %v2280 = vadd.f32 %v2018, %v2248
        %v2281 = vadd.f32 %v2019, %v2249
        %v2282 = vadd.f32 %v2020, %v2250
        %v2283 = vadd.f32 %v2021, %v2251
        %v2284 = vadd.f32 %v2022, %v2252
        %v2285 = vadd.f32 %v2023, %v2253
        %v2286 = vadd.f32 %v2024, %v2254
        %v2287 = vadd.f32 %v2025, %v2255
        %v2288 = vadd.f32 %v2026, %v2256
        %v2289 = vld [vmem:[%s1765 + $0x1] sm:$0xff]
        %v2290 = vld [vmem:[%s1765 + $0x9] sm:$0xff]
        %v2291 = vld [vmem:[%s1765 + $0x19] sm:$0xff]
        %v2292 = vld [vmem:[%s1765 + $0x21] sm:$0xff]
        %v2293 = vld [vmem:[%s1765 + $0x31] sm:$0xff]
        %v2294 = vld [vmem:[%s1765 + $0x39] sm:$0xff]
        %v2295 = vld [vmem:[%s1765 + $0x49] sm:$0xff]
        %v2296 = vld [vmem:[%s1765 + $0x51] sm:$0xff]
        %v2297 = vld [vmem:[%s1765 + $0x61] sm:$0xff]
        %v2298 = vld [vmem:[%s1765 + $0x69] sm:$0xff]
        %v2299 = vld [vmem:[%s1765 + $0x79] sm:$0xff]
        %v2300 = vld [vmem:[%s1765 + $0x81] sm:$0xff]
        %v2301 = vld [vmem:[%s1765 + $0x91] sm:$0xff]
        %v2302 = vld [vmem:[%s1765 + $0x99] sm:$0xff]
        %v2303 = vld [vmem:[%s1765 + $0xa9] sm:$0xff]
        %v2304 = vld [vmem:[%s1765 + $0xb1] sm:$0xff]
        %v2305 = vld [vmem:[%s1765 + $0xc1] sm:$0xff]
        %v2306 = vld [vmem:[%s1765 + $0xc9] sm:$0xff]
        %v2307 = vld [vmem:[%s1765 + $0xd9] sm:$0xff]
        %v2308 = vld [vmem:[%s1765 + $0xe1] sm:$0xff]
        %v2309 = vld [vmem:[%s1765 + $0xf1] sm:$0xff]
        %v2310 = vld [vmem:[%s1765 + $0xf9] sm:$0xff]
        %v2311 = vld [vmem:[%s1765 + $0x109] sm:$0xff]
        %v2312 = vld [vmem:[%s1765 + $0x111] sm:$0xff]
        %v2313 = vld [vmem:[%s1765 + $0x121] sm:$0xff]
        %v2314 = vld [vmem:[%s1765 + $0x129] sm:$0xff]
        %v2315 = vld [vmem:[%s1765 + $0x139] sm:$0xff]
        %v2316 = vld [vmem:[%s1765 + $0x141] sm:$0xff]
        %v2317 = vld [vmem:[%s1765 + $0x151] sm:$0xff]
        %v2318 = vld [vmem:[%s1765 + $0x159] sm:$0xff]
        %v2319 = vld [vmem:[%s1765 + $0x169] sm:$0xff]
        %v2320 = vld [vmem:[%s1765 + $0x171] sm:$0xff]
        %v2321 = vld [vmem:[%s1 + $0x8] sm:$0x1]
        %2323 = vset.pattern.permute.xlu0 0
        %2324 = vperm.xlu0 %2323, %v2289
        %v2325 = vpop.permute.xlu0 %2324
        %2328 = vset.pattern.permute.xlu0 0
        %2329 = vperm.xlu0 %2328, %v2290
        %v2330 = vpop.permute.xlu0 %2329
        %2333 = vset.pattern.permute.xlu0 0
        %2334 = vperm.xlu0 %2333, %v2291
        %v2335 = vpop.permute.xlu0 %2334
        %2338 = vset.pattern.permute.xlu0 0
        %2339 = vperm.xlu0 %2338, %v2292
        %v2340 = vpop.permute.xlu0 %2339
        %2343 = vset.pattern.permute.xlu0 0
        %2344 = vperm.xlu0 %2343, %v2293
        %v2345 = vpop.permute.xlu0 %2344
        %2348 = vset.pattern.permute.xlu0 0
        %2349 = vperm.xlu0 %2348, %v2294
        %v2350 = vpop.permute.xlu0 %2349
        %2353 = vset.pattern.permute.xlu0 0
        %2354 = vperm.xlu0 %2353, %v2295
        %v2355 = vpop.permute.xlu0 %2354
        %2358 = vset.pattern.permute.xlu0 0
        %2359 = vperm.xlu0 %2358, %v2296
        %v2360 = vpop.permute.xlu0 %2359
        %2363 = vset.pattern.permute.xlu0 0
        %2364 = vperm.xlu0 %2363, %v2297
        %v2365 = vpop.permute.xlu0 %2364
        %2368 = vset.pattern.permute.xlu0 0
        %2369 = vperm.xlu0 %2368, %v2298
        %v2370 = vpop.permute.xlu0 %2369
        %2373 = vset.pattern.permute.xlu0 0
        %2374 = vperm.xlu0 %2373, %v2299
        %v2375 = vpop.permute.xlu0 %2374
        %2378 = vset.pattern.permute.xlu0 0
        %2379 = vperm.xlu0 %2378, %v2300
        %v2380 = vpop.permute.xlu0 %2379
        %2383 = vset.pattern.permute.xlu0 0
        %2384 = vperm.xlu0 %2383, %v2301
        %v2385 = vpop.permute.xlu0 %2384
        %2388 = vset.pattern.permute.xlu0 0
        %2389 = vperm.xlu0 %2388, %v2302
        %v2390 = vpop.permute.xlu0 %2389
        %2393 = vset.pattern.permute.xlu0 0
        %2394 = vperm.xlu0 %2393, %v2303
        %v2395 = vpop.permute.xlu0 %2394
        %2398 = vset.pattern.permute.xlu0 0
        %2399 = vperm.xlu0 %2398, %v2304
        %v2400 = vpop.permute.xlu0 %2399
        %2403 = vset.pattern.permute.xlu0 0
        %2404 = vperm.xlu0 %2403, %v2305
        %v2405 = vpop.permute.xlu0 %2404
        %2408 = vset.pattern.permute.xlu0 0
        %2409 = vperm.xlu0 %2408, %v2306
        %v2410 = vpop.permute.xlu0 %2409
        %2413 = vset.pattern.permute.xlu0 0
        %2414 = vperm.xlu0 %2413, %v2307
        %v2415 = vpop.permute.xlu0 %2414
        %2418 = vset.pattern.permute.xlu0 0
        %2419 = vperm.xlu0 %2418, %v2308
        %v2420 = vpop.permute.xlu0 %2419
        %2423 = vset.pattern.permute.xlu0 0
        %2424 = vperm.xlu0 %2423, %v2309
        %v2425 = vpop.permute.xlu0 %2424
        %2428 = vset.pattern.permute.xlu0 0
        %2429 = vperm.xlu0 %2428, %v2310
        %v2430 = vpop.permute.xlu0 %2429
        %2433 = vset.pattern.permute.xlu0 0
        %2434 = vperm.xlu0 %2433, %v2311
        %v2435 = vpop.permute.xlu0 %2434
        %2438 = vset.pattern.permute.xlu0 0
        %2439 = vperm.xlu0 %2438, %v2312
        %v2440 = vpop.permute.xlu0 %2439
        %2443 = vset.pattern.permute.xlu0 0
        %2444 = vperm.xlu0 %2443, %v2313
        %v2445 = vpop.permute.xlu0 %2444
        %2448 = vset.pattern.permute.xlu0 0
        %2449 = vperm.xlu0 %2448, %v2314
        %v2450 = vpop.permute.xlu0 %2449
        %2453 = vset.pattern.permute.xlu0 0
        %2454 = vperm.xlu0 %2453, %v2315
        %v2455 = vpop.permute.xlu0 %2454
        %2458 = vset.pattern.permute.xlu0 0
        %2459 = vperm.xlu0 %2458, %v2316
        %v2460 = vpop.permute.xlu0 %2459
        %2463 = vset.pattern.permute.xlu0 0
        %2464 = vperm.xlu0 %2463, %v2317
        %v2465 = vpop.permute.xlu0 %2464
        %2468 = vset.pattern.permute.xlu0 0
        %2469 = vperm.xlu0 %2468, %v2318
        %v2470 = vpop.permute.xlu0 %2469
        %2473 = vset.pattern.permute.xlu0 0
        %2474 = vperm.xlu0 %2473, %v2319
        %v2475 = vpop.permute.xlu0 %2474
        %2478 = vset.pattern.permute.xlu0 0
        %2479 = vperm.xlu0 %2478, %v2320
        %v2480 = vpop.permute.xlu0 %2479
        %v2482 = vlaneseq
        %v2483 = vshrl.u32 %v2482, 7
        %v2484 = vsub.s32 0, %v2483
        %v2485 = vrot.slane %v2321, %v2484
        %v2486 = vmul.f32 %v2325, %v2485
        %v2487 = vmul.f32 %v2330, %v2485
        %v2488 = vmul.f32 %v2335, %v2485
        %v2489 = vmul.f32 %v2340, %v2485
        %v2490 = vmul.f32 %v2345, %v2485
        %v2491 = vmul.f32 %v2350, %v2485
        %v2492 = vmul.f32 %v2355, %v2485
        %v2493 = vmul.f32 %v2360, %v2485
        %v2494 = vmul.f32 %v2365, %v2485
        %v2495 = vmul.f32 %v2370, %v2485
        %v2496 = vmul.f32 %v2375, %v2485
        %v2497 = vmul.f32 %v2380, %v2485
        %v2498 = vmul.f32 %v2385, %v2485
        %v2499 = vmul.f32 %v2390, %v2485
        %v2500 = vmul.f32 %v2395, %v2485
        %v2501 = vmul.f32 %v2400, %v2485
        %v2502 = vmul.f32 %v2405, %v2485
        %v2503 = vmul.f32 %v2410, %v2485
        %v2504 = vmul.f32 %v2415, %v2485
        %v2505 = vmul.f32 %v2420, %v2485
        %v2506 = vmul.f32 %v2425, %v2485
        %v2507 = vmul.f32 %v2430, %v2485
        %v2508 = vmul.f32 %v2435, %v2485
        %v2509 = vmul.f32 %v2440, %v2485
        %v2510 = vmul.f32 %v2445, %v2485
        %v2511 = vmul.f32 %v2450, %v2485
        %v2512 = vmul.f32 %v2455, %v2485
        %v2513 = vmul.f32 %v2460, %v2485
        %v2514 = vmul.f32 %v2465, %v2485
        %v2515 = vmul.f32 %v2470, %v2485
        %v2516 = vmul.f32 %v2475, %v2485
        %v2517 = vmul.f32 %v2480, %v2485
        %v2518 = vadd.f32 %v2257, %v2486
        %v2519 = vadd.f32 %v2258, %v2487
        %v2520 = vadd.f32 %v2259, %v2488
        %v2521 = vadd.f32 %v2260, %v2489
        %v2522 = vadd.f32 %v2261, %v2490
        %v2523 = vadd.f32 %v2262, %v2491
        %v2524 = vadd.f32 %v2263, %v2492
        %v2525 = vadd.f32 %v2264, %v2493
        %v2526 = vadd.f32 %v2265, %v2494
        %v2527 = vadd.f32 %v2266, %v2495
        %v2528 = vadd.f32 %v2267, %v2496
        %v2529 = vadd.f32 %v2268, %v2497
        %v2530 = vadd.f32 %v2269, %v2498
        %v2531 = vadd.f32 %v2270, %v2499
        %v2532 = vadd.f32 %v2271, %v2500
        %v2533 = vadd.f32 %v2272, %v2501
        %v2534 = vadd.f32 %v2273, %v2502
        %v2535 = vadd.f32 %v2274, %v2503
        %v2536 = vadd.f32 %v2275, %v2504
        %v2537 = vadd.f32 %v2276, %v2505
        %v2538 = vadd.f32 %v2277, %v2506
        %v2539 = vadd.f32 %v2278, %v2507
        %v2540 = vadd.f32 %v2279, %v2508
        %v2541 = vadd.f32 %v2280, %v2509
        %v2542 = vadd.f32 %v2281, %v2510
        %v2543 = vadd.f32 %v2282, %v2511
        %v2544 = vadd.f32 %v2283, %v2512
        %v2545 = vadd.f32 %v2284, %v2513
        %v2546 = vadd.f32 %v2285, %v2514
        %v2547 = vadd.f32 %v2286, %v2515
        %v2548 = vadd.f32 %v2287, %v2516
        %v2549 = vadd.f32 %v2288, %v2517
        %v2550 = vld [vmem:[%s2] sm:$0x1]
        %v2552 = vlaneseq
        %v2553 = vshrl.u32 %v2552, 7
        %v2554 = vsub.s32 0, %v2553
        %v2555 = vrot.slane %v2550, %v2554
        %v2557 = vmul.f32 %v2518, %v2555
        %v2558 = vmul.f32 %v2519, %v2555
        %v2559 = vmul.f32 %v2520, %v2555
        %v2560 = vmul.f32 %v2521, %v2555
        %v2561 = vmul.f32 %v2522, %v2555
        %v2562 = vmul.f32 %v2523, %v2555
        %v2563 = vmul.f32 %v2524, %v2555
        %v2564 = vmul.f32 %v2525, %v2555
        %v2565 = vmul.f32 %v2526, %v2555
        %v2566 = vmul.f32 %v2527, %v2555
        %v2567 = vmul.f32 %v2528, %v2555
        %v2568 = vmul.f32 %v2529, %v2555
        %v2569 = vmul.f32 %v2530, %v2555
        %v2570 = vmul.f32 %v2531, %v2555
        %v2571 = vmul.f32 %v2532, %v2555
        %v2572 = vmul.f32 %v2533, %v2555
        %v2573 = vmul.f32 %v2534, %v2555
        %v2574 = vmul.f32 %v2535, %v2555
        %v2575 = vmul.f32 %v2536, %v2555
        %v2576 = vmul.f32 %v2537, %v2555
        %v2577 = vmul.f32 %v2538, %v2555
        %v2578 = vmul.f32 %v2539, %v2555
        %v2579 = vmul.f32 %v2540, %v2555
        %v2580 = vmul.f32 %v2541, %v2555
        %v2581 = vmul.f32 %v2542, %v2555
        %v2582 = vmul.f32 %v2543, %v2555
        %v2583 = vmul.f32 %v2544, %v2555
        %v2584 = vmul.f32 %v2545, %v2555
        %v2585 = vmul.f32 %v2546, %v2555
        %v2586 = vmul.f32 %v2547, %v2555
        %v2587 = vmul.f32 %v2548, %v2555
        %v2588 = vmul.f32 %v2549, %v2555
        %v2589 = vld [vmem:[%s3] sm:$0x1]
        %v2591 = vlaneseq
        %v2592 = vshrl.u32 %v2591, 7
        %v2593 = vsub.s32 0, %v2592
        %v2594 = vrot.slane %v2589, %v2593
        %v2596 = vadd.f32 %v2557, %v2594
        %v2597 = vadd.f32 %v2558, %v2594
        %v2598 = vadd.f32 %v2559, %v2594
        %v2599 = vadd.f32 %v2560, %v2594
        %v2600 = vadd.f32 %v2561, %v2594
        %v2601 = vadd.f32 %v2562, %v2594
        %v2602 = vadd.f32 %v2563, %v2594
        %v2603 = vadd.f32 %v2564, %v2594
        %v2604 = vadd.f32 %v2565, %v2594
        %v2605 = vadd.f32 %v2566, %v2594
        %v2606 = vadd.f32 %v2567, %v2594
        %v2607 = vadd.f32 %v2568, %v2594
        %v2608 = vadd.f32 %v2569, %v2594
        %v2609 = vadd.f32 %v2570, %v2594
        %v2610 = vadd.f32 %v2571, %v2594
        %v2611 = vadd.f32 %v2572, %v2594
        %v2612 = vadd.f32 %v2573, %v2594
        %v2613 = vadd.f32 %v2574, %v2594
        %v2614 = vadd.f32 %v2575, %v2594
        %v2615 = vadd.f32 %v2576, %v2594
        %v2616 = vadd.f32 %v2577, %v2594
        %v2617 = vadd.f32 %v2578, %v2594
        %v2618 = vadd.f32 %v2579, %v2594
        %v2619 = vadd.f32 %v2580, %v2594
        %v2620 = vadd.f32 %v2581, %v2594
        %v2621 = vadd.f32 %v2582, %v2594
        %v2622 = vadd.f32 %v2583, %v2594
        %v2623 = vadd.f32 %v2584, %v2594
        %v2624 = vadd.f32 %v2585, %v2594
        %v2625 = vadd.f32 %v2586, %v2594
        %v2626 = vadd.f32 %v2587, %v2594
        %v2627 = vadd.f32 %v2588, %v2594
        %v2628 = vxor.u32 %v2596, 2147483648
        %v2629 = vxor.u32 %v2597, 2147483648
        %v2630 = vxor.u32 %v2598, 2147483648
        %v2631 = vxor.u32 %v2599, 2147483648
        %v2632 = vxor.u32 %v2600, 2147483648
        %v2633 = vxor.u32 %v2601, 2147483648
        %v2634 = vxor.u32 %v2602, 2147483648
        %v2635 = vxor.u32 %v2603, 2147483648
        %v2636 = vxor.u32 %v2604, 2147483648
        %v2637 = vxor.u32 %v2605, 2147483648
        %v2638 = vxor.u32 %v2606, 2147483648
        %v2639 = vxor.u32 %v2607, 2147483648
        %v2640 = vxor.u32 %v2608, 2147483648
        %v2641 = vxor.u32 %v2609, 2147483648
        %v2642 = vxor.u32 %v2610, 2147483648
        %v2643 = vxor.u32 %v2611, 2147483648
        %v2644 = vxor.u32 %v2612, 2147483648
        %v2645 = vxor.u32 %v2613, 2147483648
        %v2646 = vxor.u32 %v2614, 2147483648
        %v2647 = vxor.u32 %v2615, 2147483648
        %v2648 = vxor.u32 %v2616, 2147483648
        %v2649 = vxor.u32 %v2617, 2147483648
        %v2650 = vxor.u32 %v2618, 2147483648
        %v2651 = vxor.u32 %v2619, 2147483648
        %v2652 = vxor.u32 %v2620, 2147483648
        %v2653 = vxor.u32 %v2621, 2147483648
        %v2654 = vxor.u32 %v2622, 2147483648
        %v2655 = vxor.u32 %v2623, 2147483648
        %v2656 = vxor.u32 %v2624, 2147483648
        %v2657 = vxor.u32 %v2625, 2147483648
        %v2658 = vxor.u32 %v2626, 2147483648
        %v2659 = vxor.u32 %v2627, 2147483648
        %v2660 = vmul.f32 %v2628, 1.442695
        %v2661 = vpow.pop %v2660
        %v2662 = vmul.f32 %v2629, 1.442695
        %v2663 = vpow.pop %v2662
        %v2664 = vmul.f32 %v2630, 1.442695
        %v2665 = vpow.pop %v2664
        %v2666 = vmul.f32 %v2631, 1.442695
        %v2667 = vpow.pop %v2666
        %v2668 = vmul.f32 %v2632, 1.442695
        %v2669 = vpow.pop %v2668
        %v2670 = vmul.f32 %v2633, 1.442695
        %v2671 = vpow.pop %v2670
        %v2672 = vmul.f32 %v2634, 1.442695
        %v2673 = vpow.pop %v2672
        %v2674 = vmul.f32 %v2635, 1.442695
        %v2675 = vpow.pop %v2674
        %v2676 = vmul.f32 %v2636, 1.442695
        %v2677 = vpow.pop %v2676
        %v2678 = vmul.f32 %v2637, 1.442695
        %v2679 = vpow.pop %v2678
        %v2680 = vmul.f32 %v2638, 1.442695
        %v2681 = vpow.pop %v2680
        %v2682 = vmul.f32 %v2639, 1.442695
        %v2683 = vpow.pop %v2682
        %v2684 = vmul.f32 %v2640, 1.442695
        %v2685 = vpow.pop %v2684
        %v2686 = vmul.f32 %v2641, 1.442695
        %v2687 = vpow.pop %v2686
        %v2688 = vmul.f32 %v2642, 1.442695
        %v2689 = vpow.pop %v2688
        %v2690 = vmul.f32 %v2643, 1.442695
        %v2691 = vpow.pop %v2690
        %v2692 = vmul.f32 %v2644, 1.442695
        %v2693 = vpow.pop %v2692
        %v2694 = vmul.f32 %v2645, 1.442695
        %v2695 = vpow.pop %v2694
        %v2696 = vmul.f32 %v2646, 1.442695
        %v2697 = vpow.pop %v2696
        %v2698 = vmul.f32 %v2647, 1.442695
        %v2699 = vpow.pop %v2698
        %v2700 = vmul.f32 %v2648, 1.442695
        %v2701 = vpow.pop %v2700
        %v2702 = vmul.f32 %v2649, 1.442695
        %v2703 = vpow.pop %v2702
        %v2704 = vmul.f32 %v2650, 1.442695
        %v2705 = vpow.pop %v2704
        %v2706 = vmul.f32 %v2651, 1.442695
        %v2707 = vpow.pop %v2706
        %v2708 = vmul.f32 %v2652, 1.442695
        %v2709 = vpow.pop %v2708
        %v2710 = vmul.f32 %v2653, 1.442695
        %v2711 = vpow.pop %v2710
        %v2712 = vmul.f32 %v2654, 1.442695
        %v2713 = vpow.pop %v2712
        %v2714 = vmul.f32 %v2655, 1.442695
        %v2715 = vpow.pop %v2714
        %v2716 = vmul.f32 %v2656, 1.442695
        %v2717 = vpow.pop %v2716
        %v2718 = vmul.f32 %v2657, 1.442695
        %v2719 = vpow.pop %v2718
        %v2720 = vmul.f32 %v2658, 1.442695
        %v2721 = vpow.pop %v2720
        %v2722 = vmul.f32 %v2659, 1.442695
        %v2723 = vpow.pop %v2722
        %v2724 = vadd.f32 %v2661, 1.0
        %v2725 = vadd.f32 %v2663, 1.0
        %v2726 = vadd.f32 %v2665, 1.0
        %v2727 = vadd.f32 %v2667, 1.0
        %v2728 = vadd.f32 %v2669, 1.0
        %v2729 = vadd.f32 %v2671, 1.0
        %v2730 = vadd.f32 %v2673, 1.0
        %v2731 = vadd.f32 %v2675, 1.0
        %v2732 = vadd.f32 %v2677, 1.0
        %v2733 = vadd.f32 %v2679, 1.0
        %v2734 = vadd.f32 %v2681, 1.0
        %v2735 = vadd.f32 %v2683, 1.0
        %v2736 = vadd.f32 %v2685, 1.0
        %v2737 = vadd.f32 %v2687, 1.0
        %v2738 = vadd.f32 %v2689, 1.0
        %v2739 = vadd.f32 %v2691, 1.0
        %v2740 = vadd.f32 %v2693, 1.0
        %v2741 = vadd.f32 %v2695, 1.0
        %v2742 = vadd.f32 %v2697, 1.0
        %v2743 = vadd.f32 %v2699, 1.0
        %v2744 = vadd.f32 %v2701, 1.0
        %v2745 = vadd.f32 %v2703, 1.0
        %v2746 = vadd.f32 %v2705, 1.0
        %v2747 = vadd.f32 %v2707, 1.0
        %v2748 = vadd.f32 %v2709, 1.0
        %v2749 = vadd.f32 %v2711, 1.0
        %v2750 = vadd.f32 %v2713, 1.0
        %v2751 = vadd.f32 %v2715, 1.0
        %v2752 = vadd.f32 %v2717, 1.0
        %v2753 = vadd.f32 %v2719, 1.0
        %v2754 = vadd.f32 %v2721, 1.0
        %v2755 = vadd.f32 %v2723, 1.0
        %v2756 = vrcp.pop %v2724
        %v2757 = vmul.f32 1.0, %v2756
        %v2758 = vrcp.pop %v2725
        %v2759 = vmul.f32 1.0, %v2758
        %v2760 = vrcp.pop %v2726
        %v2761 = vmul.f32 1.0, %v2760
        %v2762 = vrcp.pop %v2727
        %v2763 = vmul.f32 1.0, %v2762
        %v2764 = vrcp.pop %v2728
        %v2765 = vmul.f32 1.0, %v2764
        %v2766 = vrcp.pop %v2729
        %v2767 = vmul.f32 1.0, %v2766
        %v2768 = vrcp.pop %v2730
        %v2769 = vmul.f32 1.0, %v2768
        %v2770 = vrcp.pop %v2731
        %v2771 = vmul.f32 1.0, %v2770
        %v2772 = vrcp.pop %v2732
        %v2773 = vmul.f32 1.0, %v2772
        %v2774 = vrcp.pop %v2733
        %v2775 = vmul.f32 1.0, %v2774
        %v2776 = vrcp.pop %v2734
        %v2777 = vmul.f32 1.0, %v2776
        %v2778 = vrcp.pop %v2735
        %v2779 = vmul.f32 1.0, %v2778
        %v2780 = vrcp.pop %v2736
        %v2781 = vmul.f32 1.0, %v2780
        %v2782 = vrcp.pop %v2737
        %v2783 = vmul.f32 1.0, %v2782
        %v2784 = vrcp.pop %v2738
        %v2785 = vmul.f32 1.0, %v2784
        %v2786 = vrcp.pop %v2739
        %v2787 = vmul.f32 1.0, %v2786
        %v2788 = vrcp.pop %v2740
        %v2789 = vmul.f32 1.0, %v2788
        %v2790 = vrcp.pop %v2741
        %v2791 = vmul.f32 1.0, %v2790
        %v2792 = vrcp.pop %v2742
        %v2793 = vmul.f32 1.0, %v2792
        %v2794 = vrcp.pop %v2743
        %v2795 = vmul.f32 1.0, %v2794
        %v2796 = vrcp.pop %v2744
        %v2797 = vmul.f32 1.0, %v2796
        %v2798 = vrcp.pop %v2745
        %v2799 = vmul.f32 1.0, %v2798
        %v2800 = vrcp.pop %v2746
        %v2801 = vmul.f32 1.0, %v2800
        %v2802 = vrcp.pop %v2747
        %v2803 = vmul.f32 1.0, %v2802
        %v2804 = vrcp.pop %v2748
        %v2805 = vmul.f32 1.0, %v2804
        %v2806 = vrcp.pop %v2749
        %v2807 = vmul.f32 1.0, %v2806
        %v2808 = vrcp.pop %v2750
        %v2809 = vmul.f32 1.0, %v2808
        %v2810 = vrcp.pop %v2751
        %v2811 = vmul.f32 1.0, %v2810
        %v2812 = vrcp.pop %v2752
        %v2813 = vmul.f32 1.0, %v2812
        %v2814 = vrcp.pop %v2753
        %v2815 = vmul.f32 1.0, %v2814
        %v2816 = vrcp.pop %v2754
        %v2817 = vmul.f32 1.0, %v2816
        %v2818 = vrcp.pop %v2755
        %v2819 = vmul.f32 1.0, %v2818
        %v2820 = vmul.f32 %v2596, %v2757
        %v2821 = vmul.f32 %v2597, %v2759
        %v2822 = vmul.f32 %v2598, %v2761
        %v2823 = vmul.f32 %v2599, %v2763
        %v2824 = vmul.f32 %v2600, %v2765
        %v2825 = vmul.f32 %v2601, %v2767
        %v2826 = vmul.f32 %v2602, %v2769
        %v2827 = vmul.f32 %v2603, %v2771
        %v2828 = vmul.f32 %v2604, %v2773
        %v2829 = vmul.f32 %v2605, %v2775
        %v2830 = vmul.f32 %v2606, %v2777
        %v2831 = vmul.f32 %v2607, %v2779
        %v2832 = vmul.f32 %v2608, %v2781
        %v2833 = vmul.f32 %v2609, %v2783
        %v2834 = vmul.f32 %v2610, %v2785
        %v2835 = vmul.f32 %v2611, %v2787
        %v2836 = vmul.f32 %v2612, %v2789
        %v2837 = vmul.f32 %v2613, %v2791
        %v2838 = vmul.f32 %v2614, %v2793
        %v2839 = vmul.f32 %v2615, %v2795
        %v2840 = vmul.f32 %v2616, %v2797
        %v2841 = vmul.f32 %v2617, %v2799
        %v2842 = vmul.f32 %v2618, %v2801
        %v2843 = vmul.f32 %v2619, %v2803
        %v2844 = vmul.f32 %v2620, %v2805
        %v2845 = vmul.f32 %v2621, %v2807
        %v2846 = vmul.f32 %v2622, %v2809
        %v2847 = vmul.f32 %v2623, %v2811
        %v2848 = vmul.f32 %v2624, %v2813
        %v2849 = vmul.f32 %v2625, %v2815
        %v2850 = vmul.f32 %v2626, %v2817
        %v2851 = vmul.f32 %v2627, %v2819
        %v2852 = vpack.c.bf16 %v2821, %v2820
        %v2853 = vpack.c.bf16 %v2823, %v2822
        %v2854 = vpack.c.bf16 %v2825, %v2824
        %v2855 = vpack.c.bf16 %v2827, %v2826
        %v2856 = vpack.c.bf16 %v2829, %v2828
        %v2857 = vpack.c.bf16 %v2831, %v2830
        %v2858 = vpack.c.bf16 %v2833, %v2832
        %v2859 = vpack.c.bf16 %v2835, %v2834
        %v2860 = vpack.c.bf16 %v2837, %v2836
        %v2861 = vpack.c.bf16 %v2839, %v2838
        %v2862 = vpack.c.bf16 %v2841, %v2840
        %v2863 = vpack.c.bf16 %v2843, %v2842
        %v2864 = vpack.c.bf16 %v2845, %v2844
        %v2865 = vpack.c.bf16 %v2847, %v2846
        %v2866 = vpack.c.bf16 %v2849, %v2848
        %v2867 = vpack.c.bf16 %v2851, %v2850
        %v2884 = vunpack.c.l.b16 %v2852
        %v2885 = vunpack.c.h.b16 %v2852
        %v2886 = vunpack.c.l.b16 %v2853
        %v2887 = vunpack.c.h.b16 %v2853
        %v2888 = vunpack.c.l.b16 %v2854
        %v2889 = vunpack.c.h.b16 %v2854
        %v2890 = vunpack.c.l.b16 %v2855
        %v2891 = vunpack.c.h.b16 %v2855
        %v2892 = vunpack.c.l.b16 %v2856
        %v2893 = vunpack.c.h.b16 %v2856
        %v2894 = vunpack.c.l.b16 %v2857
        %v2895 = vunpack.c.h.b16 %v2857
        %v2896 = vunpack.c.l.b16 %v2858
        %v2897 = vunpack.c.h.b16 %v2858
        %v2898 = vunpack.c.l.b16 %v2859
        %v2899 = vunpack.c.h.b16 %v2859
        %v2900 = vunpack.c.l.b16 %v2860
        %v2901 = vunpack.c.h.b16 %v2860
        %v2902 = vunpack.c.l.b16 %v2861
        %v2903 = vunpack.c.h.b16 %v2861
        %v2904 = vunpack.c.l.b16 %v2862
        %v2905 = vunpack.c.h.b16 %v2862
        %v2906 = vunpack.c.l.b16 %v2863
        %v2907 = vunpack.c.h.b16 %v2863
        %v2908 = vunpack.c.l.b16 %v2864
        %v2909 = vunpack.c.h.b16 %v2864
        %v2910 = vunpack.c.l.b16 %v2865
        %v2911 = vunpack.c.h.b16 %v2865
        %v2912 = vunpack.c.l.b16 %v2866
        %v2913 = vunpack.c.h.b16 %v2866
        %v2914 = vunpack.c.l.b16 %v2867
        %v2915 = vunpack.c.h.b16 %v2867
        %v2916 = vpack.c.b16 %v2884, %v2884
        %v2917 = vpack.c.b16 %v2885, %v2885
        %v2918 = vpack.c.b16 %v2886, %v2886
        %v2919 = vpack.c.b16 %v2887, %v2887
        %v2920 = vpack.c.b16 %v2888, %v2888
        %v2921 = vpack.c.b16 %v2889, %v2889
        %v2922 = vpack.c.b16 %v2890, %v2890
        %v2923 = vpack.c.b16 %v2891, %v2891
        %v2924 = vpack.c.b16 %v2892, %v2892
        %v2925 = vpack.c.b16 %v2893, %v2893
        %v2926 = vpack.c.b16 %v2894, %v2894
        %v2927 = vpack.c.b16 %v2895, %v2895
        %v2928 = vpack.c.b16 %v2896, %v2896
        %v2929 = vpack.c.b16 %v2897, %v2897
        %v2930 = vpack.c.b16 %v2898, %v2898
        %v2931 = vpack.c.b16 %v2899, %v2899
        %v2932 = vpack.c.b16 %v2900, %v2900
        %v2933 = vpack.c.b16 %v2901, %v2901
        %v2934 = vpack.c.b16 %v2902, %v2902
        %v2935 = vpack.c.b16 %v2903, %v2903
        %v2936 = vpack.c.b16 %v2904, %v2904
        %v2937 = vpack.c.b16 %v2905, %v2905
        %v2938 = vpack.c.b16 %v2906, %v2906
        %v2939 = vpack.c.b16 %v2907, %v2907
        %v2940 = vpack.c.b16 %v2908, %v2908
        %v2941 = vpack.c.b16 %v2909, %v2909
        %v2942 = vpack.c.b16 %v2910, %v2910
        %v2943 = vpack.c.b16 %v2911, %v2911
        %v2944 = vpack.c.b16 %v2912, %v2912
        %v2945 = vpack.c.b16 %v2913, %v2913
        %v2946 = vpack.c.b16 %v2914, %v2914
        %v2947 = vpack.c.b16 %v2915, %v2915
        %2980 = vst [vmem:[%s190] sm:$0xf] %v2916
        %2981 = vst [vmem:[%s190 + $0x4] sm:$0xf] %v2917
        %2982 = vst [vmem:[%s190 + $0x8] sm:$0xf] %v2918
        %2983 = vst [vmem:[%s190 + $0xc] sm:$0xf] %v2919
        %2984 = vst [vmem:[%s190 + $0x10] sm:$0xf] %v2920
        %2985 = vst [vmem:[%s190 + $0x14] sm:$0xf] %v2921
        %2986 = vst [vmem:[%s190 + $0x18] sm:$0xf] %v2922
        %2987 = vst [vmem:[%s190 + $0x1c] sm:$0xf] %v2923
        %2988 = vst [vmem:[%s190 + $0x20] sm:$0xf] %v2924
        %2989 = vst [vmem:[%s190 + $0x24] sm:$0xf] %v2925
        %2990 = vst [vmem:[%s190 + $0x28] sm:$0xf] %v2926
        %2991 = vst [vmem:[%s190 + $0x2c] sm:$0xf] %v2927
        %2992 = vst [vmem:[%s190 + $0x30] sm:$0xf] %v2928
        %2993 = vst [vmem:[%s190 + $0x34] sm:$0xf] %v2929
        %2994 = vst [vmem:[%s190 + $0x38] sm:$0xf] %v2930
        %2995 = vst [vmem:[%s190 + $0x3c] sm:$0xf] %v2931
        %2996 = vst [vmem:[%s190 + $0x40] sm:$0xf] %v2932
        %2997 = vst [vmem:[%s190 + $0x44] sm:$0xf] %v2933
        %2998 = vst [vmem:[%s190 + $0x48] sm:$0xf] %v2934
        %2999 = vst [vmem:[%s190 + $0x4c] sm:$0xf] %v2935
        %3000 = vst [vmem:[%s190 + $0x50] sm:$0xf] %v2936
        %3001 = vst [vmem:[%s190 + $0x54] sm:$0xf] %v2937
        %3002 = vst [vmem:[%s190 + $0x58] sm:$0xf] %v2938
        %3003 = vst [vmem:[%s190 + $0x5c] sm:$0xf] %v2939
        %3004 = vst [vmem:[%s190 + $0x60] sm:$0xf] %v2940
        %3005 = vst [vmem:[%s190 + $0x64] sm:$0xf] %v2941
        %3006 = vst [vmem:[%s190 + $0x68] sm:$0xf] %v2942
        %3007 = vst [vmem:[%s190 + $0x6c] sm:$0xf] %v2943
        %3008 = vst [vmem:[%s190 + $0x70] sm:$0xf] %v2944
        %3009 = vst [vmem:[%s190 + $0x74] sm:$0xf] %v2945
        %3010 = vst [vmem:[%s190 + $0x78] sm:$0xf] %v2946
        %3011 = vst [vmem:[%s190 + $0x7c] sm:$0xf] %v2947
        %s3012 = sand.u32 %s115, 1
        %s3013 = scalar_lea.sflag [#allocation3], %s3012
        %s3014 = sand.u32 %s115, 1
        %s3015 = smul.addr %s3014, 128
        %s3016 = scalar_lea.vmem [#allocation2], %s3015
        // Predicated region
        $region37: #{tpu_custom_call.1} parent=35 // pred_check
          %p3017 = pneg %p125
        $region38: #{tpu_custom_call.1} parent=35 // pred_check_branch
          %3019 = sbr.rel (%p3017) target = $region40
        $region39: #{tpu_custom_call.1} parent=35 // pred_region
          %s3021 = ssub.s32 2048, 2048
          %3022 = vsyncadd %s3013, %s3021
          %s3023 = smul.addr %s18, 32
          %s3024 = smul.addr %s3023, 64
          %s3025 = scalar_lea.hbm %s4, %s3024
          %s3026 = sshll.u32 %s3016, 4
          %s3027 = int_to_ptr.vmem [resolvable:$true] %s3026
          %3032 = dma.vmem_to_hbm [thread:$0]  %s3027, 2048, %s3025, %s3013, 64, 64, 4
        $region40: #{tpu_custom_call.1} parent=35 // pred_fallthru
          _
      $region36: #{tpu_custom_call.1} parent=5 // pred_fallthru
        _
      %p3033 = scmp.le.s32.totalorder 2, %s13
      // Predicated region
      $region41: #{tpu_custom_call.1} parent=5 // pred_check
        %p3034 = pneg %p3033
      $region42: #{tpu_custom_call.1} parent=5 // pred_check_branch
        %3036 = sbr.rel (%p3034) target = $region44
      $region43: #{tpu_custom_call.1} parent=5 // pred_region
        %s3037 = ssub.s32 %s13, 2
        // Predicated region
        $region45: #{tpu_custom_call.1} parent=43 // pred_check
          %p3038 = pneg %p131
        $region46: #{tpu_custom_call.1} parent=43 // pred_check_branch
          %3040 = sbr.rel (%p3038) target = $region48
        $region47: #{tpu_custom_call.1} parent=43 // pred_region
          %s3041 = sand.u32 %s116, 1
          %s3042 = scalar_lea.sflag [#allocation3], %s3041
          %s3043 = sand.u32 %s116, 1
          %s3044 = smul.addr %s3043, 128
          %s3045 = scalar_lea.vmem [#allocation2], %s3044
          %3046 = dma.done %s3042, 2048
        $region48: #{tpu_custom_call.1} parent=43 // pred_fallthru
          _
      $region44: #{tpu_custom_call.1} parent=5 // pred_fallthru
        _
    $region6: #{tpu_custom_call.1} parent=1 // loop_footer
      %s17 = sadd.s32 1, %s13
    $region7: #{tpu_custom_call.1} parent=1 // loop_footer_branch
      %12 = sbr.rel target = $region3
    $region8: #{tpu_custom_call.1} parent=1 // loop_exit
      _
    %3047 = vsyncpa [#allocation3], 1
    %s3048 = scalar_lea.sflag [#allocation3], 1
    %3049 = vsyncpa %s3048, 1

</llo_original>
